<compile_context>
chip_gen: v7x
topology: tpu7x:2x2x1
jax: 0.10.0
libtpu: 0.0.40
codegen_flags: <defaults>
</compile_context>

<pallas_src>
import jax
import jax.numpy as jnp
from jax import lax
from jax.experimental import pallas as pl
from jax.experimental.pallas import tpu as pltpu


_PAD = 128  # lane-aligned zero pad on each side of the row-extended scratch (must be >= W)


# ----------------------------- fused kernel ---------------------------------


def _make_fused_kernel(H, W, C_in, C_mid, C_out):
    HW = H * W

    def kernel(x_ref, s1_ref, b1_ref, w1t_ref, b2_ref, wcat_ref,
               sr_ref, sl_ref, o_ref, aext_ref):
        # ---------- stage 1: BN1 + ReLU + 1x1 conv (BN2 scale folded) + BN2 shift + ReLU
        # x_ref block: (1, C_in, HW)  -> channel-major, straight out of NCHW (no transpose).
        x = x_ref[0].astype(jnp.float32)                               # (C_in, HW)
        h = jnp.maximum(x * s1_ref[...] + b1_ref[...], 0.0)           # BN1 + ReLU (f32 VPU)
        # TODO(synk): Dropout is identity in eval mode; intentionally omitted.
        a = jnp.dot(w1t_ref[...], h.astype(jnp.bfloat16),
                    preferred_element_type=jnp.float32)                # (C_mid, HW), bf16 MXU
        a = jnp.maximum(a + b2_ref[...], 0.0)                          # BN2 shift + ReLU

        # ---------- stage 2: 3x3 grouped conv (block-diagonal dense weight), pad=1
        # Row-extended scratch: [ zeros(_PAD) | a | zeros(_PAD) ] along lanes.
        # All scratch stores are 128-lane aligned; the three dy tap operands are then just
        # contiguous lane windows of this scratch (offsets _PAD + (dy-1)*W).
        aext_ref[:, :_PAD] = jnp.zeros((C_mid, _PAD), jnp.float32)
        aext_ref[:, _PAD + HW:2 * _PAD + HW] = jnp.zeros((C_mid, _PAD), jnp.float32)
        aext_ref[:, _PAD:_PAD + HW] = a

        pcat = jnp.zeros((3 * C_out, HW), jnp.float32)
        for dy in range(3):                                            # static unroll
            off = _PAD + (dy - 1) * W
            xs = aext_ref[:, off:off + HW].astype(jnp.bfloat16)        # (C_mid, HW)
            pcat = pcat + jnp.dot(wcat_ref[dy], xs,                    # (3*C_out, HW)
                                  preferred_element_type=jnp.float32)

        # pcat rows are grouped by dx:  [dx=0 | dx=1 | dx=2]  (C_out rows each).
        g0 = pcat[0 * C_out:1 * C_out]   # each output pixel must read its LEFT neighbour
        g1 = pcat[1 * C_out:2 * C_out]   # centre column tap
        g2 = pcat[2 * C_out:3 * C_out]   # each output pixel must read its RIGHT neighbour
        # Column (+/-1) shifts with in-row boundary zeroing as exact 0/1 selection matmuls
        # (unambiguous, f32-exact, MXU-only; MXU has huge headroom here).
        y = (g1
             + jnp.dot(g0, sr_ref[...], preferred_element_type=jnp.float32)
             + jnp.dot(g2, sl_ref[...], preferred_element_type=jnp.float32))

        # ---------- epilogue: write concat([x, y]) directly in NCHW-flattened layout.
        # Output block (1, C_in + C_out, HW): last dim 256 lanes -> unmasked, lane-dense stores.
        o_ref[0, :C_in, :] = x_ref[0].astype(o_ref.dtype)
        o_ref[0, C_in:, :] = y.astype(o_ref.dtype)

    return kernel


# ----------------------------- wrapper --------------------------------------


def condense_sconv_forward(x_nchw, params):
    N, C_in, H, W = x_nchw.shape
    HW = H * W
    assert W <= _PAD, "demo wrapper assumes W <= 128"

    w1t = params["w1t_bf16"]           # (C_mid, C_in)  bf16, BN2 scale folded in
    wcat = params["wcat_bf16"]         # (3, 3*C_out, C_mid) bf16, dx-major output blocks
    C_mid = w1t.shape[0]
    C_out = wcat.shape[1] // 3
    C_tot = C_in + C_out

    s1 = params["s1"].reshape(C_in, 1).astype(jnp.float32)
    b1 = params["b1"].reshape(C_in, 1).astype(jnp.float32)
    b2 = params["b2"].reshape(C_mid, 1).astype(jnp.float32)

    # Exact 0/1 column-shift selection matrices (f32, built once on host, VMEM-resident).
    idx = jnp.arange(HW)
    col = idx % W
    # sr[c, p] = 1 iff c == p-1 and p is not the first column  -> dest reads left neighbour
    sr = ((idx[:, None] == idx[None, :] - 1) & (col[None, :] != 0)).astype(jnp.float32)
    # sl[c, p] = 1 iff c == p+1 and p is not the last column   -> dest reads right neighbour
    sl = ((idx[:, None] == idx[None, :] + 1) & (col[None, :] != W - 1)).astype(jnp.float32)

    x3 = x_nchw.reshape(N, C_in, HW)   # free reshape; kernel consumes NCHW directly

    kernel = _make_fused_kernel(H, W, C_in, C_mid, C_out)
    out3 = pl.pallas_call(
        kernel,
        out_shape=jax.ShapeDtypeStruct((N, C_tot, HW), x_nchw.dtype),
        grid_spec=pltpu.PrefetchScalarGridSpec(
            num_scalar_prefetch=0,
            grid=(N,),
            in_specs=[
                pl.BlockSpec((1, C_in, HW), lambda n: (n, 0, 0)),           # x (per image)
                pl.BlockSpec((C_in, 1), lambda n: (0, 0)),                  # s1
                pl.BlockSpec((C_in, 1), lambda n: (0, 0)),                  # b1
                pl.BlockSpec((C_mid, C_in), lambda n: (0, 0)),              # w1t (bf16)
                pl.BlockSpec((C_mid, 1), lambda n: (0, 0)),                 # b2
                pl.BlockSpec((3, 3 * C_out, C_mid), lambda n: (0, 0, 0)),   # wcat (bf16)
                pl.BlockSpec((HW, HW), lambda n: (0, 0)),                   # sr
                pl.BlockSpec((HW, HW), lambda n: (0, 0)),                   # sl
            ],
            out_specs=pl.BlockSpec((1, C_tot, HW), lambda n: (n, 0, 0)),
            scratch_shapes=[pltpu.VMEM((C_mid, HW + 2 * _PAD), jnp.float32)],
        ),
        compiler_params=pltpu.CompilerParams(
            dimension_semantics=("parallel",),       # N grid points -> both v7x TensorCores
            vmem_limit_bytes=32 * 1024 * 1024,
        ),
    )(x3, s1, b1, w1t, b2, wcat, sr, sl)

    return out3.reshape(N, C_tot, H, W)              # free reshape; no transpose / concat


# ----------------------------- params / reference ---------------------------


def init_params(key, n_channels, growth_rate, groups=4, eps=1e-5):
    C_in = n_channels
    C_mid = 4 * growth_rate
    C_out = growth_rate
    in_pg = C_mid // groups
    out_pg = C_out // groups

    ks = jax.random.split(key, 10)
    # BatchNorm 1 (SelectiveConv2d.norm)
    g1 = 1.0 + 0.1 * jax.random.normal(ks[0], (C_in,), jnp.float32)
    be1 = 0.1 * jax.random.normal(ks[1], (C_in,), jnp.float32)
    m1 = 0.1 * jax.random.normal(ks[2], (C_in,), jnp.float32)
    v1 = 1.0 + 0.1 * jnp.abs(jax.random.normal(ks[3], (C_in,), jnp.float32))
    # 1x1 conv weight (PyTorch layout (C_mid, C_in, 1, 1), no bias)
    w1_oihw = jax.random.normal(ks[4], (C_mid, C_in, 1, 1), jnp.float32) * (2.0 / C_in) ** 0.5
    # BatchNorm 2 (BRC.norm)
    g2 = 1.0 + 0.1 * jax.random.normal(ks[5], (C_mid,), jnp.float32)
    be2 = 0.1 * jax.random.normal(ks[6], (C_mid,), jnp.float32)
    m2 = 0.1 * jax.random.normal(ks[7], (C_mid,), jnp.float32)
    v2 = 1.0 + 0.1 * jnp.abs(jax.random.normal(ks[8], (C_mid,), jnp.float32))
    # grouped 3x3 conv weight (PyTorch layout (C_out, C_mid/groups, 3, 3), no bias)
    w2_oihw = jax.random.normal(ks[9], (C_out, in_pg, 3, 3), jnp.float32) * (2.0 / (in_pg * 9)) ** 0.5

    # Fold eval-mode BN into per-channel scale/shift.
    s1 = g1 / jnp.sqrt(v1 + eps)
    b1 = be1 - m1 * s1
    s2 = g2 / jnp.sqrt(v2 + eps)
    b2 = be2 - m2 * s2

    # BN2 scale folded into the 1x1 weight; channel-major (C_mid, C_in); bf16 MXU operand.
    w1t_bf16 = (s2[:, None] * w1_oihw[:, :, 0, 0]).astype(jnp.bfloat16)

    # Grouped conv expressed as a full conv with block-diagonal weights: (3, 3, C_mid, C_out).
    w2_full = jnp.zeros((3, 3, C_mid, C_out), jnp.float32)
    for g in range(groups):
        blk = jnp.transpose(w2_oihw[g * out_pg:(g + 1) * out_pg], (2, 3, 1, 0))  # (3,3,in_pg,out_pg)
        w2_full = w2_full.at[:, :, g * in_pg:(g + 1) * in_pg,
                             g * out_pg:(g + 1) * out_pg].set(blk)
    # Kernel layout: wcat[dy, dx*C_out + co, cm] = w2_full[dy, dx, cm, co]
    wcat_bf16 = jnp.transpose(w2_full, (0, 1, 3, 2)).reshape(3, 3 * C_out, C_mid).astype(jnp.bfloat16)

    return {
        "s1": s1, "b1": b1, "s2": s2, "b2": b2,
        "w1t_bf16": w1t_bf16, "wcat_bf16": wcat_bf16,
        "w1_oihw": w1_oihw, "w2_oihw": w2_oihw,
        "groups": groups,
    }


def reference_forward(x_nchw, p):
    # Pure f32 XLA reference of the PyTorch module (eval mode).
    x = x_nchw.astype(jnp.float32)
    h = jnp.maximum(x * p["s1"][None, :, None, None] + p["b1"][None, :, None, None], 0.0)
    y = lax.conv_general_dilated(h, p["w1_oihw"], (1, 1), "VALID",
                                 dimension_numbers=("NCHW", "OIHW", "NCHW"))
    a = jnp.maximum(y * p["s2"][None, :, None, None] + p["b2"][None, :, None, None], 0.0)
    z = lax.conv_general_dilated(a, p["w2_oihw"], (1, 1), ((1, 1), (1, 1)),
                                 dimension_numbers=("NCHW", "OIHW", "NCHW"),
                                 feature_group_count=p["groups"])
    return jnp.concatenate([x, z], axis=1)


# ----------------------------- main ------------------------------------------


if __name__ == "__main__":
    key = jax.random.PRNGKey(0)
    n_channels, growth_rate = 8, 16          # C_in=8, C_mid=64, new features=16
    N, H, W = 2, 16, 16

    k_x, k_p = jax.random.split(key)
    x = jax.random.normal(k_x, (N, n_channels, H, W), jnp.float32)
    params = init_params(k_p, n_channels, growth_rate)

    out = condense_sconv_forward(x, params)
    out = jax.block_until_ready(out)
    assert out.shape == (N, n_channels + growth_rate, H, W), out.shape

    ref = reference_forward(x, params)

    # The concatenated input channels pass straight through the kernel: must be bit-exact.
    assert bool(jnp.array_equal(out[:, :n_channels], x)), "x passthrough mismatch"

    # New-feature channels: kernel feeds bf16 operands to the MXU (per perf guidance), so the
    # comparison against the pure-f32 reference uses a bf16-appropriate tolerance.
    y_k = out[:, n_channels:]
    y_r = ref[:, n_channels:]
    max_err = float(jnp.max(jnp.abs(y_k - y_r)))
    rel_fro = float(jnp.linalg.norm(y_k - y_r) / (jnp.linalg.norm(y_r) + 1e-12))
    assert jnp.allclose(y_k, y_r, rtol=2e-2, atol=1e-1), \
        f"max abs err {max_err}, rel fro {rel_fro}"
    assert rel_fro < 3e-2, f"relative Frobenius error {rel_fro}"

    print("KERNEL_OK")
</pallas_src>

<mosaic_0001>
module attributes {stable_mosaic.version = 11 : i64} {
  func.func @kernel(%arg0: i32, %arg1: memref<1x8x256xf32, #tpu.memory_space<vmem>>, %arg2: memref<8x1xf32, #tpu.memory_space<vmem>>, %arg3: memref<8x1xf32, #tpu.memory_space<vmem>>, %arg4: memref<64x8xbf16, #tpu.memory_space<vmem>>, %arg5: memref<64x1xf32, #tpu.memory_space<vmem>>, %arg6: memref<3x48x64xbf16, #tpu.memory_space<vmem>>, %arg7: memref<256x256xf32, #tpu.memory_space<vmem>>, %arg8: memref<256x256xf32, #tpu.memory_space<vmem>>, %arg9: memref<1x24x256xf32, #tpu.memory_space<vmem>>, %arg10: memref<64x512xf32, #tpu.memory_space<vmem>>) attributes {dimension_semantics = [#tpu.dimension_semantics<parallel>], iteration_bounds = array<i64: 2>, scalar_prefetch = 0 : i64, scratch_operands = 1 : i64, tpu.core_type = #tpu.core_type<tc>, window_params = [{transform_indices = @transform_0, window_bounds = array<i64: 1, 8, 256>}, {pipeline_mode = #tpu.pipeline_mode<synchronous>, transform_indices = @transform_1, window_bounds = array<i64: 8, 1>}, {pipeline_mode = #tpu.pipeline_mode<synchronous>, transform_indices = @transform_2, window_bounds = array<i64: 8, 1>}, {pipeline_mode = #tpu.pipeline_mode<synchronous>, transform_indices = @transform_3, window_bounds = array<i64: 64, 8>}, {pipeline_mode = #tpu.pipeline_mode<synchronous>, transform_indices = @transform_4, window_bounds = array<i64: 64, 1>}, {pipeline_mode = #tpu.pipeline_mode<synchronous>, transform_indices = @transform_5, window_bounds = array<i64: 3, 48, 64>}, {pipeline_mode = #tpu.pipeline_mode<synchronous>, transform_indices = @transform_6, window_bounds = array<i64: 256, 256>}, {pipeline_mode = #tpu.pipeline_mode<synchronous>, transform_indices = @transform_7, window_bounds = array<i64: 256, 256>}, {transform_indices = @transform_8, window_bounds = array<i64: 1, 24, 256>}]} {
    %c0 = arith.constant 0 : index
    %c0_0 = arith.constant 0 : index
    %c0_1 = arith.constant 0 : index
    %0 = vector.load %arg1[%c0, %c0_0, %c0_1] : memref<1x8x256xf32, #tpu.memory_space<vmem>>, vector<1x8x256xf32>
    %1 = vector.shape_cast %0 : vector<1x8x256xf32> to vector<8x256xf32>
    %c0_2 = arith.constant 0 : index
    %c0_3 = arith.constant 0 : index
    %2 = vector.load %arg2[%c0_2, %c0_3] : memref<8x1xf32, #tpu.memory_space<vmem>>, vector<8x1xf32>
    %3 = vector.broadcast %2 : vector<8x1xf32> to vector<8x256xf32>
    %4 = arith.mulf %1, %3 : vector<8x256xf32>
    %c0_4 = arith.constant 0 : index
    %c0_5 = arith.constant 0 : index
    %5 = vector.load %arg3[%c0_4, %c0_5] : memref<8x1xf32, #tpu.memory_space<vmem>>, vector<8x1xf32>
    %6 = vector.broadcast %5 : vector<8x1xf32> to vector<8x256xf32>
    %7 = arith.addf %4, %6 : vector<8x256xf32>
    %cst = arith.constant 0.000000e+00 : f32
    %8 = vector.broadcast %cst : f32 to vector<8x256xf32>
    %9 = arith.maximumf %7, %8 : vector<8x256xf32>
    %c0_6 = arith.constant 0 : index
    %c0_7 = arith.constant 0 : index
    %10 = vector.load %arg4[%c0_6, %c0_7] : memref<64x8xbf16, #tpu.memory_space<vmem>>, vector<64x8xbf16>
    %11 = arith.truncf %9 : vector<8x256xf32> to vector<8x256xbf16>
    %cst_8 = arith.constant dense<0.000000e+00> : vector<64x256xf32>
    %12 = tpu.matmul %10, %11, %cst_8 {dimension_numbers = #tpu.dot_dimension_numbers<[1], [0], [0], [1], [0, 0, 1, 1], [], []>} : vector<64x8xbf16>, vector<8x256xbf16>, vector<64x256xf32> -> vector<64x256xf32>
    %c0_9 = arith.constant 0 : index
    %c0_10 = arith.constant 0 : index
    %13 = vector.load %arg5[%c0_9, %c0_10] : memref<64x1xf32, #tpu.memory_space<vmem>>, vector<64x1xf32>
    %14 = vector.broadcast %13 : vector<64x1xf32> to vector<64x256xf32>
    %15 = arith.addf %12, %14 : vector<64x256xf32>
    %cst_11 = arith.constant 0.000000e+00 : f32
    %16 = vector.broadcast %cst_11 : f32 to vector<64x256xf32>
    %17 = arith.maximumf %15, %16 : vector<64x256xf32>
    %cst_12 = arith.constant 0.000000e+00 : f32
    %18 = vector.broadcast %cst_12 : f32 to vector<64x128xf32>
    %c0_13 = arith.constant 0 : index
    %c0_14 = arith.constant 0 : index
    %19 = vector.load %arg10[%c0_13, %c0_14] : memref<64x512xf32, #tpu.memory_space<vmem>>, vector<64x128xf32>
    tpu.vector_store %arg10[%c0_13, %c0_14], %18 {strides = array<i32>} : memref<64x512xf32, #tpu.memory_space<vmem>>, vector<64x128xf32>,
    %cst_15 = arith.constant 0.000000e+00 : f32
    %20 = vector.broadcast %cst_15 : f32 to vector<64x128xf32>
    %c0_16 = arith.constant 0 : index
    %c384 = arith.constant 384 : index
    %21 = vector.load %arg10[%c0_16, %c384] : memref<64x512xf32, #tpu.memory_space<vmem>>, vector<64x128xf32>
    tpu.vector_store %arg10[%c0_16, %c384], %20 {strides = array<i32>} : memref<64x512xf32, #tpu.memory_space<vmem>>, vector<64x128xf32>,
    %c0_17 = arith.constant 0 : index
    %c128 = arith.constant 128 : index
    %22 = vector.load %arg10[%c0_17, %c128] : memref<64x512xf32, #tpu.memory_space<vmem>>, vector<64x256xf32>
    tpu.vector_store %arg10[%c0_17, %c128], %17 {strides = array<i32>} : memref<64x512xf32, #tpu.memory_space<vmem>>, vector<64x256xf32>,
    %cst_18 = arith.constant 0.000000e+00 : f32
    %23 = vector.broadcast %cst_18 : f32 to vector<48x256xf32>
    %c0_19 = arith.constant 0 : index
    %c112 = arith.constant 112 : index
    %24 = vector.load %arg10[%c0_19, %c112] : memref<64x512xf32, #tpu.memory_space<vmem>>, vector<64x256xf32>
    %25 = arith.truncf %24 : vector<64x256xf32> to vector<64x256xbf16>
    %c0_20 = arith.constant 0 : index
    %c0_21 = arith.constant 0 : index
    %c0_22 = arith.constant 0 : index
    %26 = vector.load %arg6[%c0_20, %c0_21, %c0_22] : memref<3x48x64xbf16, #tpu.memory_space<vmem>>, vector<1x48x64xbf16>
    %27 = vector.shape_cast %26 : vector<1x48x64xbf16> to vector<48x64xbf16>
    %cst_23 = arith.constant dense<0.000000e+00> : vector<48x256xf32>
    %28 = tpu.matmul %27, %25, %cst_23 {dimension_numbers = #tpu.dot_dimension_numbers<[1], [0], [0], [1], [0, 0, 1, 1], [], []>} : vector<48x64xbf16>, vector<64x256xbf16>, vector<48x256xf32> -> vector<48x256xf32>
    %29 = arith.addf %23, %28 : vector<48x256xf32>
    %c0_24 = arith.constant 0 : index
    %c128_25 = arith.constant 128 : index
    %30 = vector.load %arg10[%c0_24, %c128_25] : memref<64x512xf32, #tpu.memory_space<vmem>>, vector<64x256xf32>
    %31 = arith.truncf %30 : vector<64x256xf32> to vector<64x256xbf16>
    %c1 = arith.constant 1 : index
    %c0_26 = arith.constant 0 : index
    %c0_27 = arith.constant 0 : index
    %32 = vector.load %arg6[%c1, %c0_26, %c0_27] : memref<3x48x64xbf16, #tpu.memory_space<vmem>>, vector<1x48x64xbf16>
    %33 = vector.shape_cast %32 : vector<1x48x64xbf16> to vector<48x64xbf16>
    %cst_28 = arith.constant dense<0.000000e+00> : vector<48x256xf32>
    %34 = tpu.matmul %33, %31, %cst_28 {dimension_numbers = #tpu.dot_dimension_numbers<[1], [0], [0], [1], [0, 0, 1, 1], [], []>} : vector<48x64xbf16>, vector<64x256xbf16>, vector<48x256xf32> -> vector<48x256xf32>
    %35 = arith.addf %29, %34 : vector<48x256xf32>
    %c0_29 = arith.constant 0 : index
    %c144 = arith.constant 144 : index
    %36 = vector.load %arg10[%c0_29, %c144] : memref<64x512xf32, #tpu.memory_space<vmem>>, vector<64x256xf32>
    %37 = arith.truncf %36 : vector<64x256xf32> to vector<64x256xbf16>
    %c2 = arith.constant 2 : index
    %c0_30 = arith.constant 0 : index
    %c0_31 = arith.constant 0 : index
    %38 = vector.load %arg6[%c2, %c0_30, %c0_31] : memref<3x48x64xbf16, #tpu.memory_space<vmem>>, vector<1x48x64xbf16>
    %39 = vector.shape_cast %38 : vector<1x48x64xbf16> to vector<48x64xbf16>
    %cst_32 = arith.constant dense<0.000000e+00> : vector<48x256xf32>
    %40 = tpu.matmul %39, %37, %cst_32 {dimension_numbers = #tpu.dot_dimension_numbers<[1], [0], [0], [1], [0, 0, 1, 1], [], []>} : vector<48x64xbf16>, vector<64x256xbf16>, vector<48x256xf32> -> vector<48x256xf32>
    %41 = arith.addf %35, %40 : vector<48x256xf32>
    %42 = vector.extract_strided_slice %41 {offsets = [0, 0], sizes = [16, 256], strides = [1, 1]} : vector<48x256xf32> to vector<16x256xf32>
    %43 = vector.extract_strided_slice %41 {offsets = [16, 0], sizes = [16, 256], strides = [1, 1]} : vector<48x256xf32> to vector<16x256xf32>
    %44 = vector.extract_strided_slice %41 {offsets = [32, 0], sizes = [16, 256], strides = [1, 1]} : vector<48x256xf32> to vector<16x256xf32>
    %c0_33 = arith.constant 0 : index
    %c0_34 = arith.constant 0 : index
    %45 = vector.load %arg7[%c0_33, %c0_34] : memref<256x256xf32, #tpu.memory_space<vmem>>, vector<256x256xf32>
    %cst_35 = arith.constant dense<0.000000e+00> : vector<16x256xf32>
    %46 = tpu.matmul %42, %45, %cst_35 {dimension_numbers = #tpu.dot_dimension_numbers<[1], [0], [0], [1], [0, 0, 1, 1], [], []>} : vector<16x256xf32>, vector<256x256xf32>, vector<16x256xf32> -> vector<16x256xf32>
    %47 = arith.addf %43, %46 : vector<16x256xf32>
    %c0_36 = arith.constant 0 : index
    %c0_37 = arith.constant 0 : index
    %48 = vector.load %arg8[%c0_36, %c0_37] : memref<256x256xf32, #tpu.memory_space<vmem>>, vector<256x256xf32>
    %cst_38 = arith.constant dense<0.000000e+00> : vector<16x256xf32>
    %49 = tpu.matmul %44, %48, %cst_38 {dimension_numbers = #tpu.dot_dimension_numbers<[1], [0], [0], [1], [0, 0, 1, 1], [], []>} : vector<16x256xf32>, vector<256x256xf32>, vector<16x256xf32> -> vector<16x256xf32>
    %50 = arith.addf %47, %49 : vector<16x256xf32>
    %c0_39 = arith.constant 0 : index
    %c0_40 = arith.constant 0 : index
    %c0_41 = arith.constant 0 : index
    %51 = vector.load %arg1[%c0_39, %c0_40, %c0_41] : memref<1x8x256xf32, #tpu.memory_space<vmem>>, vector<1x8x256xf32>
    %52 = vector.shape_cast %51 : vector<1x8x256xf32> to vector<8x256xf32>
    %c0_42 = arith.constant 0 : index
    %c0_43 = arith.constant 0 : index
    %c0_44 = arith.constant 0 : index
    %53 = vector.load %arg9[%c0_42, %c0_43, %c0_44] : memref<1x24x256xf32, #tpu.memory_space<vmem>>, vector<1x8x256xf32>
    %54 = vector.shape_cast %53 : vector<1x8x256xf32> to vector<8x256xf32>
    %55 = vector.shape_cast %52 : vector<8x256xf32> to vector<1x8x256xf32>
    tpu.vector_store %arg9[%c0_42, %c0_43, %c0_44], %55 {strides = array<i32>} : memref<1x24x256xf32, #tpu.memory_space<vmem>>, vector<1x8x256xf32>,
    %c0_45 = arith.constant 0 : index
    %c8 = arith.constant 8 : index
    %c0_46 = arith.constant 0 : index
    %56 = vector.load %arg9[%c0_45, %c8, %c0_46] : memref<1x24x256xf32, #tpu.memory_space<vmem>>, vector<1x16x256xf32>
    %57 = vector.shape_cast %56 : vector<1x16x256xf32> to vector<16x256xf32>
    %58 = vector.shape_cast %50 : vector<16x256xf32> to vector<1x16x256xf32>
    tpu.vector_store %arg9[%c0_45, %c8, %c0_46], %58 {strides = array<i32>} : memref<1x24x256xf32, #tpu.memory_space<vmem>>, vector<1x16x256xf32>,
    return
  }
  func.func @transform_0(%arg0: i32) -> (i32, i32, i32) {
    %c0_i32 = arith.constant 0 : i32
    %c0_i32_0 = arith.constant 0 : i32
    %c0_i32_1 = arith.constant 0 : i32
    return %arg0, %c0_i32, %c0_i32_0 : i32, i32, i32
  }
  func.func @transform_1(%arg0: i32) -> (i32, i32) {
    %c0_i32 = arith.constant 0 : i32
    %c0_i32_0 = arith.constant 0 : i32
    %c0_i32_1 = arith.constant 0 : i32
    return %c0_i32, %c0_i32_0 : i32, i32
  }
  func.func @transform_2(%arg0: i32) -> (i32, i32) {
    %c0_i32 = arith.constant 0 : i32
    %c0_i32_0 = arith.constant 0 : i32
    %c0_i32_1 = arith.constant 0 : i32
    return %c0_i32, %c0_i32_0 : i32, i32
  }
  func.func @transform_3(%arg0: i32) -> (i32, i32) {
    %c0_i32 = arith.constant 0 : i32
    %c0_i32_0 = arith.constant 0 : i32
    %c0_i32_1 = arith.constant 0 : i32
    return %c0_i32, %c0_i32_0 : i32, i32
  }
  func.func @transform_4(%arg0: i32) -> (i32, i32) {
    %c0_i32 = arith.constant 0 : i32
    %c0_i32_0 = arith.constant 0 : i32
    %c0_i32_1 = arith.constant 0 : i32
    return %c0_i32, %c0_i32_0 : i32, i32
  }
  func.func @transform_5(%arg0: i32) -> (i32, i32, i32) {
    %c0_i32 = arith.constant 0 : i32
    %c0_i32_0 = arith.constant 0 : i32
    %c0_i32_1 = arith.constant 0 : i32
    %c0_i32_2 = arith.constant 0 : i32
    return %c0_i32, %c0_i32_0, %c0_i32_1 : i32, i32, i32
  }
  func.func @transform_6(%arg0: i32) -> (i32, i32) {
    %c0_i32 = arith.constant 0 : i32
    %c0_i32_0 = arith.constant 0 : i32
    %c0_i32_1 = arith.constant 0 : i32
    return %c0_i32, %c0_i32_0 : i32, i32
  }
  func.func @transform_7(%arg0: i32) -> (i32, i32) {
    %c0_i32 = arith.constant 0 : i32
    %c0_i32_0 = arith.constant 0 : i32
    %c0_i32_1 = arith.constant 0 : i32
    return %c0_i32, %c0_i32_0 : i32, i32
  }
  func.func @transform_8(%arg0: i32) -> (i32, i32, i32) {
    %c0_i32 = arith.constant 0 : i32
    %c0_i32_0 = arith.constant 0 : i32
    %c0_i32_1 = arith.constant 0 : i32
    return %arg0, %c0_i32, %c0_i32_0 : i32, i32, i32
  }
}

</mosaic_0001>

<llo_original>
// kernel: tpu_custom_call.1
$region0: #{tpu_custom_call.1}
  #allocation0 [shape = 'u32[]', space=smem, size = 0x4, offset = 0x4, fixed_abs, tag = 'smem constant byte address 0x4 - core index']
  #allocation1 [shape = 'u32[144,128]{1,0:T(1,128)}', space=vmem, size = 0x12000, scoped, tag = 'internal scratch']
  #allocation2 [shape = 'f32[64,512]{1,0:T(8,128)}', space=vmem, size = 0x20000, scoped, tag = 'scratch operand']
  %s0 = inlined_call_operand.vmem [shape: f32[2,8,256], index: 0, kind: input, shape index: {}]
  %s1 = inlined_call_operand.vmem [shape: f32[8,1], index: 1, kind: input, shape index: {}]
  %s2 = inlined_call_operand.vmem [shape: f32[8,1], index: 2, kind: input, shape index: {}]
  %s3 = inlined_call_operand.vmem [shape: bf16[64,8], index: 3, kind: input, shape index: {}]
  %s4 = inlined_call_operand.vmem [shape: f32[64,1], index: 4, kind: input, shape index: {}]
  %s5 = inlined_call_operand.vmem [shape: bf16[3,48,64], index: 5, kind: input, shape index: {}]
  %s6 = inlined_call_operand.hbm [shape: f32[256,256], index: 6, kind: input, shape index: {}]
  %s7 = inlined_call_operand.hbm [shape: f32[256,256], index: 7, kind: input, shape index: {}]
  %s8 = inlined_call_operand.hbm [shape: f32[2,24,256], index: 8, kind: output, shape index: {}]
  %s9 = sld [smem:[#allocation0]]
  $region73: #{tpu_custom_call.1} parent=0
    _
  %s11 = ssub.s32 1, %s9
  %s12 = scalar_select 0, %s11, %s9
  $region1: #{tpu_custom_call.1} parent=0
    #allocation3 [shape = 'u8[262144]{0}', space=vmem, size = 0x40000, scoped, tag = 'input window, operand 6, single buffered']
    #allocation4 [shape = 's32[2]{0}', space=sflag, size = 0x8, scoped, tag = 'scoped memory for tpu_custom_call.1']
    #allocation5 [shape = 's32[2]{0}', space=sflag, size = 0x8, scoped, tag = 'scoped memory for tpu_custom_call.1']
    #allocation6 [shape = 'u8[262144]{0}', space=vmem, size = 0x40000, scoped, tag = 'input window, operand 7, single buffered']
    #allocation7 [shape = 's32[1]{0}', space=sflag, size = 0x4, scoped, tag = 'scoped memory for tpu_custom_call.1']
    #allocation8 [shape = 'u8[49152]{0}', space=vmem, size = 0xc000, scoped, tag = 'output window, operand 0']
    %13 = vsyncpa [#allocation4], 0
    %14 = vsyncpa [#allocation7], 0
    %15 = vsyncpa [#allocation5], 0
    %s16 = scalar_lea.sflag [#allocation5], 1
    %17 = vsyncpa %s16, 0
    loop: start=0, step=1, limit=4
    $region2: #{tpu_custom_call.1} parent=1 // loop_pre_header
      _
    $region3: #{tpu_custom_call.1} parent=1 // loop_header
      %s19 = sphi 0, %s23
      %p20 = scmp.ge.s32.totalorder %s19, 4
      %s29 = sphi 0, %s31
      %s32 = sphi 0, %s29
      %s33 = sphi 0, %s32
      %s49 = sphi 0, %s33
      %s53 = sphi 0, %s53
      %s55 = sphi 0, %s53
      %s56 = sphi 0, %s55
      %s70 = sphi 0, %s56
      %s74 = sphi 0, %s74
      %s76 = sphi 0, %s74
      %s77 = sphi 0, %s76
      %s91 = sphi 0, %s77
      %s95 = sphi 0, %s95
      %s97 = sphi 0, %s95
      %s98 = sphi 0, %s97
      %s112 = sphi 0, %s98
      %s116 = sphi 0, %s116
      %s118 = sphi 0, %s116
      %s119 = sphi 0, %s118
      %s133 = sphi 0, %s119
      %s137 = sphi 0, %s137
      %s139 = sphi 0, %s137
      %s140 = sphi 0, %s139
      %s154 = sphi 0, %s140
      %s158 = sphi 0, %s158
      %s160 = sphi 0, %s158
      %s161 = sphi 0, %s160
      %s175 = sphi 0, %s161
      %s179 = sphi 0, %s179
      %s181 = sphi 0, %s179
      %s182 = sphi 0, %s181
      %s196 = sphi 0, %s182
      %s202 = sphi 0, %s204
      %s205 = sphi 0, %s202
      %s206 = sphi 0, %s205
      %s222 = sphi 0, %s206
    $region4: #{tpu_custom_call.1} parent=1 // loop_header_branch
      %22 = sbr.rel (%p20) target = $region8
    $region5: #{tpu_custom_call.1} parent=1 // loop_body
      %s24 = ssub.s32 %s19, 1
      %s25 = ssub.s32 %s19, 2
      %s26 = sadd.s32 %s19, 1
      %s27 = ssub.s32 %s19, %s26
      %p28 = scmp.eq.s32.totalorder %s27, 0
      %s30 = sadd.s32 %s29, 1
      %s31 = scalar_select %p28, %s29, %s30
      %p34 = pneg %p28
      %p35 = scmp.eq.s32.totalorder %s19, 1
      %p36 = por %p34, %p35
      %p37 = scmp.ne.s32.totalorder %s29, %s32
      %p38 = scmp.eq.s32.totalorder %s19, 0
      %p39 = por %p37, %p38
      %p40 = scmp.ne.s32.totalorder %s29, %s32
      %p41 = scmp.eq.s32.totalorder %s24, 1
      %p42 = por %p40, %p41
      %p43 = scmp.ne.s32.totalorder %s32, %s33
      %p44 = scmp.eq.s32.totalorder %s24, 0
      %p45 = por %p43, %p44
      %p46 = scmp.ne.s32.totalorder %s32, %s33
      %p47 = scmp.eq.s32.totalorder %s25, 1
      %p48 = por %p46, %p47
      %p50 = scmp.ne.s32.totalorder %s33, %s49
      %p51 = scmp.eq.s32.totalorder %s25, 0
      %p52 = por %p50, %p51
      %s54 = sadd.s32 %s53, 1
      %p57 = scmp.eq.s32.totalorder %s19, 1
      %p58 = scmp.ne.s32.totalorder %s53, %s55
      %p59 = scmp.eq.s32.totalorder %s19, 0
      %p60 = por %p58, %p59
      %p61 = scmp.ne.s32.totalorder %s53, %s55
      %p62 = scmp.eq.s32.totalorder %s24, 1
      %p63 = por %p61, %p62
      %p64 = scmp.ne.s32.totalorder %s55, %s56
      %p65 = scmp.eq.s32.totalorder %s24, 0
      %p66 = por %p64, %p65
      %p67 = scmp.ne.s32.totalorder %s55, %s56
      %p68 = scmp.eq.s32.totalorder %s25, 1
      %p69 = por %p67, %p68
      %p71 = scmp.ne.s32.totalorder %s56, %s70
      %p72 = scmp.eq.s32.totalorder %s25, 0
      %p73 = por %p71, %p72
      %s75 = sadd.s32 %s74, 1
      %p78 = scmp.eq.s32.totalorder %s19, 1
      %p79 = scmp.ne.s32.totalorder %s74, %s76
      %p80 = scmp.eq.s32.totalorder %s19, 0
      %p81 = por %p79, %p80
      %p82 = scmp.ne.s32.totalorder %s74, %s76
      %p83 = scmp.eq.s32.totalorder %s24, 1
      %p84 = por %p82, %p83
      %p85 = scmp.ne.s32.totalorder %s76, %s77
      %p86 = scmp.eq.s32.totalorder %s24, 0
      %p87 = por %p85, %p86
      %p88 = scmp.ne.s32.totalorder %s76, %s77
      %p89 = scmp.eq.s32.totalorder %s25, 1
      %p90 = por %p88, %p89
      %p92 = scmp.ne.s32.totalorder %s77, %s91
      %p93 = scmp.eq.s32.totalorder %s25, 0
      %p94 = por %p92, %p93
      %s96 = sadd.s32 %s95, 1
      %p99 = scmp.eq.s32.totalorder %s19, 1
      %p100 = scmp.ne.s32.totalorder %s95, %s97
      %p101 = scmp.eq.s32.totalorder %s19, 0
      %p102 = por %p100, %p101
      %p103 = scmp.ne.s32.totalorder %s95, %s97
      %p104 = scmp.eq.s32.totalorder %s24, 1
      %p105 = por %p103, %p104
      %p106 = scmp.ne.s32.totalorder %s97, %s98
      %p107 = scmp.eq.s32.totalorder %s24, 0
      %p108 = por %p106, %p107
      %p109 = scmp.ne.s32.totalorder %s97, %s98
      %p110 = scmp.eq.s32.totalorder %s25, 1
      %p111 = por %p109, %p110
      %p113 = scmp.ne.s32.totalorder %s98, %s112
      %p114 = scmp.eq.s32.totalorder %s25, 0
      %p115 = por %p113, %p114
      %s117 = sadd.s32 %s116, 1
      %p120 = scmp.eq.s32.totalorder %s19, 1
      %p121 = scmp.ne.s32.totalorder %s116, %s118
      %p122 = scmp.eq.s32.totalorder %s19, 0
      %p123 = por %p121, %p122
      %p124 = scmp.ne.s32.totalorder %s116, %s118
      %p125 = scmp.eq.s32.totalorder %s24, 1
      %p126 = por %p124, %p125
      %p127 = scmp.ne.s32.totalorder %s118, %s119
      %p128 = scmp.eq.s32.totalorder %s24, 0
      %p129 = por %p127, %p128
      %p130 = scmp.ne.s32.totalorder %s118, %s119
      %p131 = scmp.eq.s32.totalorder %s25, 1
      %p132 = por %p130, %p131
      %p134 = scmp.ne.s32.totalorder %s119, %s133
      %p135 = scmp.eq.s32.totalorder %s25, 0
      %p136 = por %p134, %p135
      %s138 = sadd.s32 %s137, 1
      %p141 = scmp.eq.s32.totalorder %s19, 1
      %p142 = scmp.ne.s32.totalorder %s137, %s139
      %p143 = scmp.eq.s32.totalorder %s19, 0
      %p144 = por %p142, %p143
      %p145 = scmp.ne.s32.totalorder %s137, %s139
      %p146 = scmp.eq.s32.totalorder %s24, 1
      %p147 = por %p145, %p146
      %p148 = scmp.ne.s32.totalorder %s139, %s140
      %p149 = scmp.eq.s32.totalorder %s24, 0
      %p150 = por %p148, %p149
      %p151 = scmp.ne.s32.totalorder %s139, %s140
      %p152 = scmp.eq.s32.totalorder %s25, 1
      %p153 = por %p151, %p152
      %p155 = scmp.ne.s32.totalorder %s140, %s154
      %p156 = scmp.eq.s32.totalorder %s25, 0
      %p157 = por %p155, %p156
      %s159 = sadd.s32 %s158, 1
      %p162 = scmp.eq.s32.totalorder %s19, 1
      %p163 = scmp.ne.s32.totalorder %s158, %s160
      %p164 = scmp.eq.s32.totalorder %s19, 0
      %p165 = por %p163, %p164
      %p166 = scmp.ne.s32.totalorder %s158, %s160
      %p167 = scmp.eq.s32.totalorder %s24, 1
      %p168 = por %p166, %p167
      %p169 = scmp.ne.s32.totalorder %s160, %s161
      %p170 = scmp.eq.s32.totalorder %s24, 0
      %p171 = por %p169, %p170
      %p172 = scmp.ne.s32.totalorder %s160, %s161
      %p173 = scmp.eq.s32.totalorder %s25, 1
      %p174 = por %p172, %p173
      %p176 = scmp.ne.s32.totalorder %s161, %s175
      %p177 = scmp.eq.s32.totalorder %s25, 0
      %p178 = por %p176, %p177
      %s180 = sadd.s32 %s179, 1
      %p183 = scmp.eq.s32.totalorder %s19, 1
      %p184 = scmp.ne.s32.totalorder %s179, %s181
      %p185 = scmp.eq.s32.totalorder %s19, 0
      %p186 = por %p184, %p185
      %p187 = scmp.ne.s32.totalorder %s179, %s181
      %p188 = scmp.eq.s32.totalorder %s24, 1
      %p189 = por %p187, %p188
      %p190 = scmp.ne.s32.totalorder %s181, %s182
      %p191 = scmp.eq.s32.totalorder %s24, 0
      %p192 = por %p190, %p191
      %p193 = scmp.ne.s32.totalorder %s181, %s182
      %p194 = scmp.eq.s32.totalorder %s25, 1
      %p195 = por %p193, %p194
      %p197 = scmp.ne.s32.totalorder %s182, %s196
      %p198 = scmp.eq.s32.totalorder %s25, 0
      %p199 = por %p197, %p198
      %s200 = ssub.s32 %s19, %s26
      %p201 = scmp.eq.s32.totalorder %s200, 0
      %s203 = sadd.s32 %s202, 1
      %s204 = scalar_select %p201, %s202, %s203
      %p207 = pneg %p201
      %p208 = scmp.eq.s32.totalorder %s19, 1
      %p209 = por %p207, %p208
      %p210 = scmp.ne.s32.totalorder %s202, %s205
      %p211 = scmp.eq.s32.totalorder %s19, 0
      %p212 = por %p210, %p211
      %p213 = scmp.ne.s32.totalorder %s202, %s205
      %p214 = scmp.eq.s32.totalorder %s24, 1
      %p215 = por %p213, %p214
      %p216 = scmp.ne.s32.totalorder %s205, %s206
      %p217 = scmp.eq.s32.totalorder %s24, 0
      %p218 = por %p216, %p217
      %p219 = scmp.ne.s32.totalorder %s205, %s206
      %p220 = scmp.eq.s32.totalorder %s25, 1
      %p221 = por %p219, %p220
      %p223 = scmp.ne.s32.totalorder %s206, %s222
      %p224 = scmp.eq.s32.totalorder %s25, 0
      %p225 = por %p223, %p224
      %p226 = scmp.le.s32.totalorder 1, %s19
      %p227 = scmp.lt.s32.totalorder %s19, 3
      %p228 = pnand %p226, %p227
      %p229 = pneg %p228
      // Predicated region
      $region9: #{tpu_custom_call.1} parent=5 // pred_check
        _
      $region10: #{tpu_custom_call.1} parent=5 // pred_check_branch
        %231 = sbr.rel (%p228) target = $region12
      $region11: #{tpu_custom_call.1} parent=5 // pred_region
        %s232 = ssub.s32 %s19, 1
        // Predicated region
        $region13: #{tpu_custom_call.1} parent=11 // pred_check
          %p233 = pneg %p66
        $region14: #{tpu_custom_call.1} parent=11 // pred_check_branch
          %235 = sbr.rel (%p233) target = $region16
        $region15: #{tpu_custom_call.1} parent=11 // pred_region
          _
        $region16: #{tpu_custom_call.1} parent=11 // pred_fallthru
          _
        // Predicated region
        $region17: #{tpu_custom_call.1} parent=11 // pred_check
          %p236 = pneg %p87
        $region18: #{tpu_custom_call.1} parent=11 // pred_check_branch
          %238 = sbr.rel (%p236) target = $region20
        $region19: #{tpu_custom_call.1} parent=11 // pred_region
          _
        $region20: #{tpu_custom_call.1} parent=11 // pred_fallthru
          _
        // Predicated region
        $region21: #{tpu_custom_call.1} parent=11 // pred_check
          %p239 = pneg %p108
        $region22: #{tpu_custom_call.1} parent=11 // pred_check_branch
          %241 = sbr.rel (%p239) target = $region24
        $region23: #{tpu_custom_call.1} parent=11 // pred_region
          _
        $region24: #{tpu_custom_call.1} parent=11 // pred_fallthru
          _
        // Predicated region
        $region25: #{tpu_custom_call.1} parent=11 // pred_check
          %p242 = pneg %p129
        $region26: #{tpu_custom_call.1} parent=11 // pred_check_branch
          %244 = sbr.rel (%p242) target = $region28
        $region27: #{tpu_custom_call.1} parent=11 // pred_region
          _
        $region28: #{tpu_custom_call.1} parent=11 // pred_fallthru
          _
        // Predicated region
        $region29: #{tpu_custom_call.1} parent=11 // pred_check
          %p245 = pneg %p150
        $region30: #{tpu_custom_call.1} parent=11 // pred_check_branch
          %247 = sbr.rel (%p245) target = $region32
        $region31: #{tpu_custom_call.1} parent=11 // pred_region
          _
        $region32: #{tpu_custom_call.1} parent=11 // pred_fallthru
          _
        // Predicated region
        $region33: #{tpu_custom_call.1} parent=11 // pred_check
          %p248 = pneg %p171
        $region34: #{tpu_custom_call.1} parent=11 // pred_check_branch
          %250 = sbr.rel (%p248) target = $region36
        $region35: #{tpu_custom_call.1} parent=11 // pred_region
          %s252 = ssub.s32 8192, 8192
          %253 = vsyncadd [#allocation4], %s252
          %s254 = sshll.u32 [#allocation3], 4
          %s255 = int_to_ptr.vmem [resolvable:$true] %s254
          %260 = dma.hbm_to_vmem [thread:$0]  %s6, 8192, %s255, [#allocation4], 256, 256, 16
        $region36: #{tpu_custom_call.1} parent=11 // pred_fallthru
          _
        // Predicated region
        $region37: #{tpu_custom_call.1} parent=11 // pred_check
          %p261 = pneg %p192
        $region38: #{tpu_custom_call.1} parent=11 // pred_check_branch
          %263 = sbr.rel (%p261) target = $region40
        $region39: #{tpu_custom_call.1} parent=11 // pred_region
          %s265 = ssub.s32 8192, 8192
          %266 = vsyncadd [#allocation7], %s265
          %s267 = sshll.u32 [#allocation6], 4
          %s268 = int_to_ptr.vmem [resolvable:$true] %s267
          %273 = dma.hbm_to_vmem [thread:$0]  %s7, 8192, %s268, [#allocation7], 256, 256, 16
        $region40: #{tpu_custom_call.1} parent=11 // pred_fallthru
          _
      $region12: #{tpu_custom_call.1} parent=5 // pred_fallthru
        _
      %p274 = scmp.lt.s32.totalorder %s19, 2
      // Predicated region
      $region41: #{tpu_custom_call.1} parent=5 // pred_check
        %p275 = pneg %p274
      $region42: #{tpu_custom_call.1} parent=5 // pred_check_branch
        %277 = sbr.rel (%p275) target = $region44
      $region43: #{tpu_custom_call.1} parent=5 // pred_region
        // Predicated region
        $region45: #{tpu_custom_call.1} parent=43 // pred_check
          %p278 = pneg %p39
        $region46: #{tpu_custom_call.1} parent=43 // pred_check_branch
          %280 = sbr.rel (%p278) target = $region48
        $region47: #{tpu_custom_call.1} parent=43 // pred_region
          %p281 = scmp.lt.s32.totalorder %s19, 1
          %s282 = scalar_select %p281, %s19, 1
          %s283 = smul.addr %s282, 2
          %s284 = smul.addr %s283, 8
          %s285 = scalar_lea.vmem %s0, %s284
        $region48: #{tpu_custom_call.1} parent=43 // pred_fallthru
          _
      $region44: #{tpu_custom_call.1} parent=5 // pred_fallthru
        _
      %p286 = scmp.le.s32.totalorder 1, %s19
      %p287 = scmp.lt.s32.totalorder %s19, 3
      %p288 = pnand %p286, %p287
      %p289 = pneg %p288
      // Predicated region
      $region49: #{tpu_custom_call.1} parent=5 // pred_check
        _
      $region50: #{tpu_custom_call.1} parent=5 // pred_check_branch
        %291 = sbr.rel (%p288) target = $region52
      $region51: #{tpu_custom_call.1} parent=5 // pred_region
        %s292 = ssub.s32 %s19, 1
        // Predicated region
        $region53: #{tpu_custom_call.1} parent=51 // pred_check
          %p293 = pneg %p171
        $region54: #{tpu_custom_call.1} parent=51 // pred_check_branch
          %295 = sbr.rel (%p293) target = $region56
        $region55: #{tpu_custom_call.1} parent=51 // pred_region
          %296 = dma.done [#allocation4], 8192
        $region56: #{tpu_custom_call.1} parent=51 // pred_fallthru
          _
        // Predicated region
        $region57: #{tpu_custom_call.1} parent=51 // pred_check
          %p297 = pneg %p192
        $region58: #{tpu_custom_call.1} parent=51 // pred_check_branch
          %299 = sbr.rel (%p297) target = $region60
        $region59: #{tpu_custom_call.1} parent=51 // pred_region
          %300 = dma.done [#allocation7], 8192
        $region60: #{tpu_custom_call.1} parent=51 // pred_fallthru
          _
        %p301 = scmp.lt.s32.totalorder %s24, 1
        %s302 = scalar_select %p301, %s24, 1
        %s303 = smul.addr %s302, 2
        %s304 = smul.addr %s303, 8
        %s305 = scalar_lea.vmem %s0, %s304
        %p306 = pneg %p45
        %p307 = pneg %p42
        %p308 = pneg %p66
        %p309 = pneg %p63
        %p310 = pneg %p87
        %p311 = pneg %p84
        %p312 = pneg %p108
        %p313 = pneg %p105
        %p314 = pneg %p129
        %p315 = pneg %p126
        %p316 = pneg %p150
        %p317 = pneg %p147
        %p318 = pneg %p171
        %p319 = pneg %p168
        %p320 = pneg %p192
        %p321 = pneg %p189
        %p322 = pneg %p218
        %p323 = pneg %p215
        %s324 = sand.u32 %s205, 1
        %s325 = scalar_lea.sflag [#allocation5], %s324
        %s326 = sand.u32 %s205, 1
        %s327 = smul.addr %s326, 48
        %s328 = scalar_lea.vmem [#allocation8], %s327
        %p329 = scmp.lt.s32.totalorder %s24, 1
        %s330 = scalar_select %p329, %s24, 1
        %s331 = smul.addr %s330, 2
        %s332 = smul.addr %s331, 8
        %s333 = scalar_lea.vmem %s0, %s332
        %v335 = vld [vmem:[%s333] sm:$0xff]
        %v336 = vld [vmem:[%s333 + $0x8] sm:$0xff]
        %v337 = vld [vmem:[%s1] sm:$0xff]
        %339 = vset.pattern.permute.xlu0 0
        %340 = vperm.xlu0 %339, %v337
        %v341 = vpop.permute.xlu0 %340
        %v343 = vmul.f32 %v335, %v341
        %v344 = vmul.f32 %v336, %v341
        %v345 = vld [vmem:[%s2] sm:$0xff]
        %347 = vset.pattern.permute.xlu0 0
        %348 = vperm.xlu0 %347, %v345
        %v349 = vpop.permute.xlu0 %348
        %v351 = vadd.f32 %v343, %v349
        %v352 = vadd.f32 %v344, %v349
        %v353 = vmax.f32 %v351, 0.0
        %v354 = vmax.f32 %v352, 0.0
        %v355 = vld [vmem:[%s3] sm:$0xf]
        %v356 = vld [vmem:[%s3 + $0x4] sm:$0xf]
        %v357 = vld [vmem:[%s3 + $0x8] sm:$0xf]
        %v358 = vld [vmem:[%s3 + $0xc] sm:$0xf]
        %v359 = vld [vmem:[%s3 + $0x10] sm:$0xf]
        %v360 = vld [vmem:[%s3 + $0x14] sm:$0xf]
        %v361 = vld [vmem:[%s3 + $0x18] sm:$0xf]
        %v362 = vld [vmem:[%s3 + $0x1c] sm:$0xf]
        %v363 = vpack.c.bf16 %v353, %v353
        %v364 = vpack.c.bf16 %v354, %v354
        %v365 = vld [vmem:[%s4] sm:$0xff]
        %v366 = vld [vmem:[%s4 + $0x8] sm:$0xff]
        %v367 = vld [vmem:[%s4 + $0x10] sm:$0xff]
        %v368 = vld [vmem:[%s4 + $0x18] sm:$0xff]
        %v369 = vld [vmem:[%s4 + $0x20] sm:$0xff]
        %v370 = vld [vmem:[%s4 + $0x28] sm:$0xff]
        %v371 = vld [vmem:[%s4 + $0x30] sm:$0xff]
        %v372 = vld [vmem:[%s4 + $0x38] sm:$0xff]
        %374 = vset.pattern.permute.xlu0 0
        %375 = vperm.xlu0 %374, %v365
        %v376 = vpop.permute.xlu0 %375
        %379 = vset.pattern.permute.xlu0 0
        %380 = vperm.xlu0 %379, %v366
        %v381 = vpop.permute.xlu0 %380
        %384 = vset.pattern.permute.xlu0 0
        %385 = vperm.xlu0 %384, %v367
        %v386 = vpop.permute.xlu0 %385
        %389 = vset.pattern.permute.xlu0 0
        %390 = vperm.xlu0 %389, %v368
        %v391 = vpop.permute.xlu0 %390
        %394 = vset.pattern.permute.xlu0 0
        %395 = vperm.xlu0 %394, %v369
        %v396 = vpop.permute.xlu0 %395
        %399 = vset.pattern.permute.xlu0 0
        %400 = vperm.xlu0 %399, %v370
        %v401 = vpop.permute.xlu0 %400
        %404 = vset.pattern.permute.xlu0 0
        %405 = vperm.xlu0 %404, %v371
        %v406 = vpop.permute.xlu0 %405
        %409 = vset.pattern.permute.xlu0 0
        %410 = vperm.xlu0 %409, %v372
        %v411 = vpop.permute.xlu0 %410
        %v421 = vunpack.c.l.b16 %v355
        %v422 = vunpack.c.l.b16 %v356
        %v423 = vunpack.c.l.b16 %v357
        %v424 = vunpack.c.l.b16 %v358
        %v425 = vunpack.c.l.b16 %v359
        %v426 = vunpack.c.l.b16 %v360
        %v427 = vunpack.c.l.b16 %v361
        %v428 = vunpack.c.l.b16 %v362
        %v429 = vpack.c.b16 %v422, %v421
        %v430 = vpack.c.b16 %v424, %v423
        %v431 = vpack.c.b16 %v426, %v425
        %v432 = vpack.c.b16 %v428, %v427
        %vm433 = vcmask 64512
        %v435 = vsel %vm433, %v429, 0
        %v438 = vsel %vm433, %v430, 0
        %v441 = vsel %vm433, %v431, 0
        %v444 = vsel %vm433, %v432, 0
        %vm446 = vcmask 1043456
        %v448 = vsel %vm446, %v363, 0
        %v451 = vsel %vm446, %v364, 0
        %453 = vmatprep.subr.bf16.mxu0 %v451
        %454 = vmatpush1.bf16.msra.mxu0 %v448
        %455 = vmatprep.subr.bf16.mxu0 0
        %456 = vmatpush1.bf16.msra.mxu0 0
        %457 = vmatprep.subr.bf16.mxu0 0
        %458 = vmatpush1.bf16.msra.mxu0 0
        %459 = vmatprep.subr.bf16.mxu0 0
        %460 = vmatpush1.bf16.msra.mxu0 0
        %461 = vmatprep.subr.bf16.mxu0 0
        %462 = vmatpush1.bf16.msra.mxu0 0
        %463 = vmatprep.subr.bf16.mxu0 0
        %464 = vmatpush1.bf16.msra.mxu0 0
        %465 = vmatprep.subr.bf16.mxu0 0
        %466 = vmatpush1.bf16.msra.mxu0 0
        %467 = vmatprep.subr.bf16.mxu0 0
        %468 = vmatpush1.bf16.msra.mxu0 0
        %469 = vmatprep.subr.bf16.mxu0 0
        %470 = vmatpush1.bf16.msra.mxu0 0
        %471 = vmatprep.subr.bf16.mxu0 0
        %472 = vmatpush1.bf16.msra.mxu0 0
        %473 = vmatprep.subr.bf16.mxu0 0
        %474 = vmatpush1.bf16.msra.mxu0 0
        %475 = vmatprep.subr.bf16.mxu0 0
        %476 = vmatpush1.bf16.msra.mxu0 0
        %477 = vmatprep.subr.bf16.mxu0 0
        %478 = vmatpush1.bf16.msra.mxu0 0
        %479 = vmatprep.subr.bf16.mxu0 0
        %480 = vmatpush1.bf16.msra.mxu0 0
        %481 = vmatprep.subr.bf16.mxu0 0
        %482 = vmatpush1.bf16.msra.mxu0 0
        %483 = vmatprep.subr.bf16.mxu0 0
        %484 = vmatpush1.bf16.msra.mxu0 0
        %485 = vmatprep.mubr.bf16.mxu0 0
        %486 = vmatmul.mubr.bf16.gmra.mrb[0].mxu0 %v435
        %v487 = vpop.f32.mrb[0].mxu0
        %v488 = vadd.f32 %v376, %v487
        %v489 = vpop.f32.mrb[0].mxu0
        %v490 = vadd.f32 %v376, %v489
        %v491 = vpop.f32.mrb[0].mxu0
        %v492 = vadd.f32 %v381, %v491
        %v493 = vpop.f32.mrb[0].mxu0
        %v494 = vadd.f32 %v381, %v493
        %495 = vmatprep.mubr.bf16.mxu0 0
        %496 = vmatmul.mubr.bf16.gmra.mrb[0].mxu0 %v438
        %v497 = vpop.f32.mrb[0].mxu0
        %v498 = vadd.f32 %v386, %v497
        %v499 = vpop.f32.mrb[0].mxu0
        %v500 = vadd.f32 %v386, %v499
        %v501 = vpop.f32.mrb[0].mxu0
        %v502 = vadd.f32 %v391, %v501
        %v503 = vpop.f32.mrb[0].mxu0
        %v504 = vadd.f32 %v391, %v503
        %505 = vmatprep.mubr.bf16.mxu0 0
        %506 = vmatmul.mubr.bf16.gmra.mrb[0].mxu0 %v441
        %v507 = vpop.f32.mrb[0].mxu0
        %v508 = vadd.f32 %v396, %v507
        %v509 = vpop.f32.mrb[0].mxu0
        %v510 = vadd.f32 %v396, %v509
        %v511 = vpop.f32.mrb[0].mxu0
        %v512 = vadd.f32 %v401, %v511
        %v513 = vpop.f32.mrb[0].mxu0
        %v514 = vadd.f32 %v401, %v513
        %515 = vmatprep.mubr.bf16.mxu0 0
        %516 = vmatmul.mubr.bf16.gmra.mrb[0].mxu0 %v444
        %v517 = vpop.f32.mrb[0].mxu0
        %v518 = vadd.f32 %v406, %v517
        %v519 = vpop.f32.mrb[0].mxu0
        %v520 = vadd.f32 %v406, %v519
        %v521 = vpop.f32.mrb[0].mxu0
        %v522 = vadd.f32 %v411, %v521
        %v523 = vpop.f32.mrb[0].mxu0
        %v524 = vadd.f32 %v411, %v523
        %525 = vdwg.mxu0
        %v526 = vmax.f32 %v488, 0.0
        %v527 = vmax.f32 %v490, 0.0
        %v528 = vmax.f32 %v492, 0.0
        %v529 = vmax.f32 %v494, 0.0
        %v530 = vmax.f32 %v498, 0.0
        %v531 = vmax.f32 %v500, 0.0
        %v532 = vmax.f32 %v502, 0.0
        %v533 = vmax.f32 %v504, 0.0
        %v534 = vmax.f32 %v508, 0.0
        %v535 = vmax.f32 %v510, 0.0
        %v536 = vmax.f32 %v512, 0.0
        %v537 = vmax.f32 %v514, 0.0
        %v538 = vmax.f32 %v518, 0.0
        %v539 = vmax.f32 %v520, 0.0
        %v540 = vmax.f32 %v522, 0.0
        %v541 = vmax.f32 %v524, 0.0
        %542 = vst [vmem:[#allocation2] sm:$0xff] 0.0
        %543 = vst [vmem:[#allocation2 + $0x20] sm:$0xff] 0.0
        %544 = vst [vmem:[#allocation2 + $0x40] sm:$0xff] 0.0
        %545 = vst [vmem:[#allocation2 + $0x60] sm:$0xff] 0.0
        %546 = vst [vmem:[#allocation2 + $0x80] sm:$0xff] 0.0
        %547 = vst [vmem:[#allocation2 + $0xa0] sm:$0xff] 0.0
        %548 = vst [vmem:[#allocation2 + $0xc0] sm:$0xff] 0.0
        %549 = vst [vmem:[#allocation2 + $0xe0] sm:$0xff] 0.0
        %550 = vst [vmem:[#allocation2 + $0x18] sm:$0xff] 0.0
        %551 = vst [vmem:[#allocation2 + $0x38] sm:$0xff] 0.0
        %552 = vst [vmem:[#allocation2 + $0x58] sm:$0xff] 0.0
        %553 = vst [vmem:[#allocation2 + $0x78] sm:$0xff] 0.0
        %554 = vst [vmem:[#allocation2 + $0x98] sm:$0xff] 0.0
        %555 = vst [vmem:[#allocation2 + $0xb8] sm:$0xff] 0.0
        %556 = vst [vmem:[#allocation2 + $0xd8] sm:$0xff] 0.0
        %557 = vst [vmem:[#allocation2 + $0xf8] sm:$0xff] 0.0
        %558 = vst [vmem:[#allocation2 + $0x8] sm:$0xff] %v526
        %559 = vst [vmem:[#allocation2 + $0x10] sm:$0xff] %v527
        %560 = vst [vmem:[#allocation2 + $0x28] sm:$0xff] %v528
        %561 = vst [vmem:[#allocation2 + $0x30] sm:$0xff] %v529
        %562 = vst [vmem:[#allocation2 + $0x48] sm:$0xff] %v530
        %563 = vst [vmem:[#allocation2 + $0x50] sm:$0xff] %v531
        %564 = vst [vmem:[#allocation2 + $0x68] sm:$0xff] %v532
        %565 = vst [vmem:[#allocation2 + $0x70] sm:$0xff] %v533
        %566 = vst [vmem:[#allocation2 + $0x88] sm:$0xff] %v534
        %567 = vst [vmem:[#allocation2 + $0x90] sm:$0xff] %v535
        %568 = vst [vmem:[#allocation2 + $0xa8] sm:$0xff] %v536
        %569 = vst [vmem:[#allocation2 + $0xb0] sm:$0xff] %v537
        %570 = vst [vmem:[#allocation2 + $0xc8] sm:$0xff] %v538
        %571 = vst [vmem:[#allocation2 + $0xd0] sm:$0xff] %v539
        %572 = vst [vmem:[#allocation2 + $0xe8] sm:$0xff] %v540
        %573 = vst [vmem:[#allocation2 + $0xf0] sm:$0xff] %v541
        %v574 = vld [vmem:[#allocation2] sm:$0xff]
        %v575 = vld [vmem:[#allocation2 + $0x8] sm:$0xff]
        %v576 = vld [vmem:[#allocation2 + $0x10] sm:$0xff]
        %v577 = vld [vmem:[#allocation2 + $0x20] sm:$0xff]
        %v578 = vld [vmem:[#allocation2 + $0x28] sm:$0xff]
        %v579 = vld [vmem:[#allocation2 + $0x30] sm:$0xff]
        %v580 = vld [vmem:[#allocation2 + $0x40] sm:$0xff]
        %v581 = vld [vmem:[#allocation2 + $0x48] sm:$0xff]
        %v582 = vld [vmem:[#allocation2 + $0x50] sm:$0xff]
        %v583 = vld [vmem:[#allocation2 + $0x60] sm:$0xff]
        %v584 = vld [vmem:[#allocation2 + $0x68] sm:$0xff]
        %v585 = vld [vmem:[#allocation2 + $0x70] sm:$0xff]
        %v586 = vld [vmem:[#allocation2 + $0x80] sm:$0xff]
        %v587 = vld [vmem:[#allocation2 + $0x88] sm:$0xff]
        %v588 = vld [vmem:[#allocation2 + $0x90] sm:$0xff]
        %v589 = vld [vmem:[#allocation2 + $0xa0] sm:$0xff]
        %v590 = vld [vmem:[#allocation2 + $0xa8] sm:$0xff]
        %v591 = vld [vmem:[#allocation2 + $0xb0] sm:$0xff]
        %v592 = vld [vmem:[#allocation2 + $0xc0] sm:$0xff]
        %v593 = vld [vmem:[#allocation2 + $0xc8] sm:$0xff]
        %v594 = vld [vmem:[#allocation2 + $0xd0] sm:$0xff]
        %v595 = vld [vmem:[#allocation2 + $0xe0] sm:$0xff]
        %v596 = vld [vmem:[#allocation2 + $0xe8] sm:$0xff]
        %v597 = vld [vmem:[#allocation2 + $0xf0] sm:$0xff]
        %v598 = vpack.c.bf16 %v577, %v574
        %v599 = vpack.c.bf16 %v578, %v575
        %v600 = vpack.c.bf16 %v579, %v576
        %v601 = vpack.c.bf16 %v583, %v580
        %v602 = vpack.c.bf16 %v584, %v581
        %v603 = vpack.c.bf16 %v585, %v582
        %v604 = vpack.c.bf16 %v589, %v586
        %v605 = vpack.c.bf16 %v590, %v587
        %v606 = vpack.c.bf16 %v591, %v588
        %v607 = vpack.c.bf16 %v595, %v592
        %v608 = vpack.c.bf16 %v596, %v593
        %v609 = vpack.c.bf16 %v597, %v594
        %v610 = vld [vmem:[%s5] sm:$0xf]
        %v611 = vld [vmem:[%s5 + $0x4] sm:$0xf]
        %v612 = vld [vmem:[%s5 + $0x8] sm:$0xf]
        %v613 = vld [vmem:[%s5 + $0xc] sm:$0xf]
        %v614 = vld [vmem:[%s5 + $0x10] sm:$0xf]
        %v615 = vld [vmem:[%s5 + $0x14] sm:$0xf]
        %s616 = scalar_lea.vmem %s5, 24
        %v617 = vld [vmem:[%s616] sm:$0xf]
        %v618 = vld [vmem:[%s616 + $0x4] sm:$0xf]
        %v619 = vld [vmem:[%s616 + $0x8] sm:$0xf]
        %v620 = vld [vmem:[%s616 + $0xc] sm:$0xf]
        %v621 = vld [vmem:[%s616 + $0x10] sm:$0xf]
        %v622 = vld [vmem:[%s616 + $0x14] sm:$0xf]
        %v629 = vunpack.c.l.b16 %v617
        %v630 = vunpack.c.l.b16 %v618
        %v631 = vunpack.c.l.b16 %v619
        %v632 = vunpack.c.l.b16 %v620
        %v633 = vunpack.c.l.b16 %v621
        %v634 = vunpack.c.l.b16 %v622
        %v635 = vpack.c.b16 %v630, %v629
        %v636 = vpack.c.b16 %v632, %v631
        %v637 = vpack.c.b16 %v634, %v633
        %vm638 = vcmask 523264
        %v640 = vsel %vm638, %v635, 0
        %v643 = vsel %vm638, %v636, 0
        %v646 = vsel %vm638, %v637, 0
        %648 = vmatprep.subr.bf16.mxu0 %v600
        %649 = vmatpush1.bf16.msra.mxu0 %v599
        %650 = vmatprep.subr.bf16.mxu0 %v603
        %651 = vmatpush1.bf16.msra.mxu0 %v602
        %652 = vmatprep.subr.bf16.mxu0 %v606
        %653 = vmatpush1.bf16.msra.mxu0 %v605
        %654 = vmatprep.subr.bf16.mxu0 %v609
        %655 = vmatpush1.bf16.msra.mxu0 %v608
        %656 = vmatprep.subr.bf16.mxu0 0
        %657 = vmatpush1.bf16.msra.mxu0 0
        %658 = vmatprep.subr.bf16.mxu0 0
        %659 = vmatpush1.bf16.msra.mxu0 0
        %660 = vmatprep.subr.bf16.mxu0 0
        %661 = vmatpush1.bf16.msra.mxu0 0
        %662 = vmatprep.subr.bf16.mxu0 0
        %663 = vmatpush1.bf16.msra.mxu0 0
        %664 = vmatprep.subr.bf16.mxu0 0
        %665 = vmatpush1.bf16.msra.mxu0 0
        %666 = vmatprep.subr.bf16.mxu0 0
        %667 = vmatpush1.bf16.msra.mxu0 0
        %668 = vmatprep.subr.bf16.mxu0 0
        %669 = vmatpush1.bf16.msra.mxu0 0
        %670 = vmatprep.subr.bf16.mxu0 0
        %671 = vmatpush1.bf16.msra.mxu0 0
        %672 = vmatprep.subr.bf16.mxu0 0
        %673 = vmatpush1.bf16.msra.mxu0 0
        %674 = vmatprep.subr.bf16.mxu0 0
        %675 = vmatpush1.bf16.msra.mxu0 0
        %676 = vmatprep.subr.bf16.mxu0 0
        %677 = vmatpush1.bf16.msra.mxu0 0
        %678 = vmatprep.subr.bf16.mxu0 0
        %679 = vmatpush1.bf16.msra.mxu0 0
        %680 = vmatprep.mubr.bf16.mxu0 0
        %681 = vmatmul.mubr.bf16.gmra.mrb[0].mxu0 %v640
        %v682 = vpop.f32.mrb[0].mxu0
        %v683 = vadd.f32 0.0, %v682
        %v684 = vpop.f32.mrb[0].mxu0
        %v685 = vadd.f32 0.0, %v684
        %v686 = vpop.f32.mrb[0].mxu0
        %v687 = vadd.f32 0.0, %v686
        %v688 = vpop.f32.mrb[0].mxu0
        %v689 = vadd.f32 0.0, %v688
        %690 = vmatprep.mubr.bf16.mxu0 0
        %691 = vmatmul.mubr.bf16.gmra.mrb[0].mxu0 %v643
        %v692 = vpop.f32.mrb[0].mxu0
        %v693 = vadd.f32 0.0, %v692
        %v694 = vpop.f32.mrb[0].mxu0
        %v695 = vadd.f32 0.0, %v694
        %v696 = vpop.f32.mrb[0].mxu0
        %v697 = vadd.f32 0.0, %v696
        %v698 = vpop.f32.mrb[0].mxu0
        %v699 = vadd.f32 0.0, %v698
        %700 = vmatprep.mubr.bf16.mxu0 0
        %701 = vmatmul.mubr.bf16.gmra.mrb[0].mxu0 %v646
        %v702 = vpop.f32.mrb[0].mxu0
        %v703 = vadd.f32 0.0, %v702
        %v704 = vpop.f32.mrb[0].mxu0
        %v705 = vadd.f32 0.0, %v704
        %v706 = vpop.f32.mrb[0].mxu0
        %v707 = vadd.f32 0.0, %v706
        %v708 = vpop.f32.mrb[0].mxu0
        %v709 = vadd.f32 0.0, %v708
        %710 = vdwg.mxu0
        %v717 = vunpack.c.l.b16 %v610
        %v718 = vunpack.c.l.b16 %v611
        %v719 = vunpack.c.l.b16 %v612
        %v720 = vunpack.c.l.b16 %v613
        %v721 = vunpack.c.l.b16 %v614
        %v722 = vunpack.c.l.b16 %v615
        %v723 = vpack.c.b16 %v718, %v717
        %v724 = vpack.c.b16 %v720, %v719
        %v725 = vpack.c.b16 %v722, %v721
        %738 = vrot.lane.b32.xlu0 %v598, 16
        %v739 = vpop.permute.xlu0 %738
        %740 = vrot.lane.b32.xlu0 %v599, 16
        %v741 = vpop.permute.xlu0 %740
        %742 = vrot.lane.b32.xlu0 %v600, 16
        %v743 = vpop.permute.xlu0 %742
        %744 = vrot.lane.b32.xlu0 %v601, 16
        %v745 = vpop.permute.xlu0 %744
        %746 = vrot.lane.b32.xlu0 %v602, 16
        %v747 = vpop.permute.xlu0 %746
        %748 = vrot.lane.b32.xlu0 %v603, 16
        %v749 = vpop.permute.xlu0 %748
        %750 = vrot.lane.b32.xlu0 %v604, 16
        %v751 = vpop.permute.xlu0 %750
        %752 = vrot.lane.b32.xlu0 %v605, 16
        %v753 = vpop.permute.xlu0 %752
        %754 = vrot.lane.b32.xlu0 %v606, 16
        %v755 = vpop.permute.xlu0 %754
        %756 = vrot.lane.b32.xlu0 %v607, 16
        %v757 = vpop.permute.xlu0 %756
        %758 = vrot.lane.b32.xlu0 %v608, 16
        %v759 = vpop.permute.xlu0 %758
        %760 = vrot.lane.b32.xlu0 %v609, 16
        %v761 = vpop.permute.xlu0 %760
        %vm762 = vcmask 130048
        %v763 = vsel %vm762, %v739, %v741
        %v764 = vsel %vm762, %v741, %v743
        %v765 = vsel %vm762, %v745, %v747
        %v766 = vsel %vm762, %v747, %v749
        %v767 = vsel %vm762, %v751, %v753
        %v768 = vsel %vm762, %v753, %v755
        %v769 = vsel %vm762, %v757, %v759
        %v770 = vsel %vm762, %v759, %v761
        %v780 = vsel %vm638, %v723, 0
        %v783 = vsel %vm638, %v724, 0
        %v786 = vsel %vm638, %v725, 0
        %788 = vmatprep.subr.bf16.mxu0 %v764
        %789 = vmatpush1.bf16.msra.mxu0 %v763
        %790 = vmatprep.subr.bf16.mxu0 %v766
        %791 = vmatpush1.bf16.msra.mxu0 %v765
        %792 = vmatprep.subr.bf16.mxu0 %v768
        %793 = vmatpush1.bf16.msra.mxu0 %v767
        %794 = vmatprep.subr.bf16.mxu0 %v770
        %795 = vmatpush1.bf16.msra.mxu0 %v769
        %796 = vmatprep.subr.bf16.mxu0 0
        %797 = vmatpush1.bf16.msra.mxu0 0
        %798 = vmatprep.subr.bf16.mxu0 0
        %799 = vmatpush1.bf16.msra.mxu0 0
        %800 = vmatprep.subr.bf16.mxu0 0
        %801 = vmatpush1.bf16.msra.mxu0 0
        %802 = vmatprep.subr.bf16.mxu0 0
        %803 = vmatpush1.bf16.msra.mxu0 0
        %804 = vmatprep.subr.bf16.mxu0 0
        %805 = vmatpush1.bf16.msra.mxu0 0
        %806 = vmatprep.subr.bf16.mxu0 0
        %807 = vmatpush1.bf16.msra.mxu0 0
        %808 = vmatprep.subr.bf16.mxu0 0
        %809 = vmatpush1.bf16.msra.mxu0 0
        %810 = vmatprep.subr.bf16.mxu0 0
        %811 = vmatpush1.bf16.msra.mxu0 0
        %812 = vmatprep.subr.bf16.mxu0 0
        %813 = vmatpush1.bf16.msra.mxu0 0
        %814 = vmatprep.subr.bf16.mxu0 0
        %815 = vmatpush1.bf16.msra.mxu0 0
        %816 = vmatprep.subr.bf16.mxu0 0
        %817 = vmatpush1.bf16.msra.mxu0 0
        %818 = vmatprep.subr.bf16.mxu0 0
        %819 = vmatpush1.bf16.msra.mxu0 0
        %820 = vmatprep.mubr.bf16.mxu0 0
        %821 = vmatmul.mubr.bf16.gmra.mrb[0].mxu0 %v780
        %v822 = vpop.f32.mrb[0].mxu0
        %v823 = vadd.f32 %v683, %v822
        %v824 = vpop.f32.mrb[0].mxu0
        %v825 = vadd.f32 %v685, %v824
        %v826 = vpop.f32.mrb[0].mxu0
        %v827 = vadd.f32 %v687, %v826
        %v828 = vpop.f32.mrb[0].mxu0
        %v829 = vadd.f32 %v689, %v828
        %830 = vmatprep.mubr.bf16.mxu0 0
        %831 = vmatmul.mubr.bf16.gmra.mrb[0].mxu0 %v783
        %v832 = vpop.f32.mrb[0].mxu0
        %v833 = vadd.f32 %v693, %v832
        %v834 = vpop.f32.mrb[0].mxu0
        %v835 = vadd.f32 %v695, %v834
        %v836 = vpop.f32.mrb[0].mxu0
        %v837 = vadd.f32 %v697, %v836
        %v838 = vpop.f32.mrb[0].mxu0
        %v839 = vadd.f32 %v699, %v838
        %840 = vmatprep.mubr.bf16.mxu0 0
        %841 = vmatmul.mubr.bf16.gmra.mrb[0].mxu0 %v786
        %v842 = vpop.f32.mrb[0].mxu0
        %v843 = vadd.f32 %v703, %v842
        %v844 = vpop.f32.mrb[0].mxu0
        %v845 = vadd.f32 %v705, %v844
        %v846 = vpop.f32.mrb[0].mxu0
        %v847 = vadd.f32 %v707, %v846
        %v848 = vpop.f32.mrb[0].mxu0
        %v849 = vadd.f32 %v709, %v848
        %850 = vdwg.mxu0
        %v851 = vld [vmem:[#allocation2 + $0x8] sm:$0xff]
        %v852 = vld [vmem:[#allocation2 + $0x10] sm:$0xff]
        %v853 = vld [vmem:[#allocation2 + $0x18] sm:$0xff]
        %v854 = vld [vmem:[#allocation2 + $0x28] sm:$0xff]
        %v855 = vld [vmem:[#allocation2 + $0x30] sm:$0xff]
        %v856 = vld [vmem:[#allocation2 + $0x38] sm:$0xff]
        %v857 = vld [vmem:[#allocation2 + $0x48] sm:$0xff]
        %v858 = vld [vmem:[#allocation2 + $0x50] sm:$0xff]
        %v859 = vld [vmem:[#allocation2 + $0x58] sm:$0xff]
        %v860 = vld [vmem:[#allocation2 + $0x68] sm:$0xff]
        %v861 = vld [vmem:[#allocation2 + $0x70] sm:$0xff]
        %v862 = vld [vmem:[#allocation2 + $0x78] sm:$0xff]
        %v863 = vld [vmem:[#allocation2 + $0x88] sm:$0xff]
        %v864 = vld [vmem:[#allocation2 + $0x90] sm:$0xff]
        %v865 = vld [vmem:[#allocation2 + $0x98] sm:$0xff]
        %v866 = vld [vmem:[#allocation2 + $0xa8] sm:$0xff]
        %v867 = vld [vmem:[#allocation2 + $0xb0] sm:$0xff]
        %v868 = vld [vmem:[#allocation2 + $0xb8] sm:$0xff]
        %v869 = vld [vmem:[#allocation2 + $0xc8] sm:$0xff]
        %v870 = vld [vmem:[#allocation2 + $0xd0] sm:$0xff]
        %v871 = vld [vmem:[#allocation2 + $0xd8] sm:$0xff]
        %v872 = vld [vmem:[#allocation2 + $0xe8] sm:$0xff]
        %v873 = vld [vmem:[#allocation2 + $0xf0] sm:$0xff]
        %v874 = vld [vmem:[#allocation2 + $0xf8] sm:$0xff]
        %v875 = vpack.c.bf16 %v854, %v851
        %v876 = vpack.c.bf16 %v855, %v852
        %v877 = vpack.c.bf16 %v856, %v853
        %v878 = vpack.c.bf16 %v860, %v857
        %v879 = vpack.c.bf16 %v861, %v858
        %v880 = vpack.c.bf16 %v862, %v859
        %v881 = vpack.c.bf16 %v866, %v863
        %v882 = vpack.c.bf16 %v867, %v864
        %v883 = vpack.c.bf16 %v868, %v865
        %v884 = vpack.c.bf16 %v872, %v869
        %v885 = vpack.c.bf16 %v873, %v870
        %v886 = vpack.c.bf16 %v874, %v871
        %s887 = scalar_lea.vmem %s5, 48
        %v888 = vld [vmem:[%s887] sm:$0xf]
        %v889 = vld [vmem:[%s887 + $0x4] sm:$0xf]
        %v890 = vld [vmem:[%s887 + $0x8] sm:$0xf]
        %v891 = vld [vmem:[%s887 + $0xc] sm:$0xf]
        %v892 = vld [vmem:[%s887 + $0x10] sm:$0xf]
        %v893 = vld [vmem:[%s887 + $0x14] sm:$0xf]
        %v900 = vunpack.c.l.b16 %v888
        %v901 = vunpack.c.l.b16 %v889
        %v902 = vunpack.c.l.b16 %v890
        %v903 = vunpack.c.l.b16 %v891
        %v904 = vunpack.c.l.b16 %v892
        %v905 = vunpack.c.l.b16 %v893
        %v906 = vpack.c.b16 %v901, %v900
        %v907 = vpack.c.b16 %v903, %v902
        %v908 = vpack.c.b16 %v905, %v904
        %921 = vrot.lane.b32.xlu0 %v875, 112
        %v922 = vpop.permute.xlu0 %921
        %923 = vrot.lane.b32.xlu0 %v876, 112
        %v924 = vpop.permute.xlu0 %923
        %925 = vrot.lane.b32.xlu0 %v877, 112
        %v926 = vpop.permute.xlu0 %925
        %927 = vrot.lane.b32.xlu0 %v878, 112
        %v928 = vpop.permute.xlu0 %927
        %929 = vrot.lane.b32.xlu0 %v879, 112
        %v930 = vpop.permute.xlu0 %929
        %931 = vrot.lane.b32.xlu0 %v880, 112
        %v932 = vpop.permute.xlu0 %931
        %933 = vrot.lane.b32.xlu0 %v881, 112
        %v934 = vpop.permute.xlu0 %933
        %935 = vrot.lane.b32.xlu0 %v882, 112
        %v936 = vpop.permute.xlu0 %935
        %937 = vrot.lane.b32.xlu0 %v883, 112
        %v938 = vpop.permute.xlu0 %937
        %939 = vrot.lane.b32.xlu0 %v884, 112
        %v940 = vpop.permute.xlu0 %939
        %941 = vrot.lane.b32.xlu0 %v885, 112
        %v942 = vpop.permute.xlu0 %941
        %943 = vrot.lane.b32.xlu0 %v886, 112
        %v944 = vpop.permute.xlu0 %943
        %vm945 = vcmask 916480
        %v946 = vsel %vm945, %v922, %v924
        %v947 = vsel %vm945, %v924, %v926
        %v948 = vsel %vm945, %v928, %v930
        %v949 = vsel %vm945, %v930, %v932
        %v950 = vsel %vm945, %v934, %v936
        %v951 = vsel %vm945, %v936, %v938
        %v952 = vsel %vm945, %v940, %v942
        %v953 = vsel %vm945, %v942, %v944
        %v963 = vsel %vm638, %v906, 0
        %v966 = vsel %vm638, %v907, 0
        %v969 = vsel %vm638, %v908, 0
        %971 = vmatprep.subr.bf16.mxu0 %v947
        %972 = vmatpush1.bf16.msra.mxu0 %v946
        %973 = vmatprep.subr.bf16.mxu0 %v949
        %974 = vmatpush1.bf16.msra.mxu0 %v948
        %975 = vmatprep.subr.bf16.mxu0 %v951
        %976 = vmatpush1.bf16.msra.mxu0 %v950
        %977 = vmatprep.subr.bf16.mxu0 %v953
        %978 = vmatpush1.bf16.msra.mxu0 %v952
        %979 = vmatprep.subr.bf16.mxu0 0
        %980 = vmatpush1.bf16.msra.mxu0 0
        %981 = vmatprep.subr.bf16.mxu0 0
        %982 = vmatpush1.bf16.msra.mxu0 0
        %983 = vmatprep.subr.bf16.mxu0 0
        %984 = vmatpush1.bf16.msra.mxu0 0
        %985 = vmatprep.subr.bf16.mxu0 0
        %986 = vmatpush1.bf16.msra.mxu0 0
        %987 = vmatprep.subr.bf16.mxu0 0
        %988 = vmatpush1.bf16.msra.mxu0 0
        %989 = vmatprep.subr.bf16.mxu0 0
        %990 = vmatpush1.bf16.msra.mxu0 0
        %991 = vmatprep.subr.bf16.mxu0 0
        %992 = vmatpush1.bf16.msra.mxu0 0
        %993 = vmatprep.subr.bf16.mxu0 0
        %994 = vmatpush1.bf16.msra.mxu0 0
        %995 = vmatprep.subr.bf16.mxu0 0
        %996 = vmatpush1.bf16.msra.mxu0 0
        %997 = vmatprep.subr.bf16.mxu0 0
        %998 = vmatpush1.bf16.msra.mxu0 0
        %999 = vmatprep.subr.bf16.mxu0 0
        %1000 = vmatpush1.bf16.msra.mxu0 0
        %1001 = vmatprep.subr.bf16.mxu0 0
        %1002 = vmatpush1.bf16.msra.mxu0 0
        %1003 = vmatprep.mubr.bf16.mxu0 0
        %1004 = vmatmul.mubr.bf16.gmra.mrb[0].mxu0 %v963
        %v1005 = vpop.f32.mrb[0].mxu0
        %v1006 = vadd.f32 0.0, %v1005
        %v1007 = vpop.f32.mrb[0].mxu0
        %v1008 = vadd.f32 0.0, %v1007
        %v1009 = vpop.f32.mrb[0].mxu0
        %v1010 = vadd.f32 0.0, %v1009
        %v1011 = vpop.f32.mrb[0].mxu0
        %v1012 = vadd.f32 0.0, %v1011
        %1013 = vmatprep.mubr.bf16.mxu0 0
        %1014 = vmatmul.mubr.bf16.gmra.mrb[0].mxu0 %v966
        %v1015 = vpop.f32.mrb[0].mxu0
        %v1016 = vadd.f32 0.0, %v1015
        %v1017 = vpop.f32.mrb[0].mxu0
        %v1018 = vadd.f32 0.0, %v1017
        %v1019 = vpop.f32.mrb[0].mxu0
        %v1020 = vadd.f32 0.0, %v1019
        %v1021 = vpop.f32.mrb[0].mxu0
        %v1022 = vadd.f32 0.0, %v1021
        %1023 = vmatprep.mubr.bf16.mxu0 0
        %1024 = vmatmul.mubr.bf16.gmra.mrb[0].mxu0 %v969
        %v1025 = vpop.f32.mrb[0].mxu0
        %v1026 = vadd.f32 0.0, %v1025
        %v1027 = vpop.f32.mrb[0].mxu0
        %v1028 = vadd.f32 0.0, %v1027
        %v1029 = vpop.f32.mrb[0].mxu0
        %v1030 = vadd.f32 0.0, %v1029
        %v1031 = vpop.f32.mrb[0].mxu0
        %v1032 = vadd.f32 0.0, %v1031
        %1033 = vdwg.mxu0
        %v1034 = vadd.f32 %v823, %v1006
        %v1035 = vadd.f32 %v825, %v1008
        %v1036 = vadd.f32 %v827, %v1010
        %v1037 = vadd.f32 %v829, %v1012
        %v1038 = vadd.f32 %v833, %v1016
        %v1039 = vadd.f32 %v835, %v1018
        %v1040 = vadd.f32 %v837, %v1020
        %v1041 = vadd.f32 %v839, %v1022
        %v1042 = vadd.f32 %v843, %v1026
        %v1043 = vadd.f32 %v845, %v1028
        %v1044 = vadd.f32 %v847, %v1030
        %v1045 = vadd.f32 %v849, %v1032
        %v1046 = vld [vmem:[#allocation3] sm:$0xff]
        %v1047 = vld [vmem:[#allocation3 + $0x8] sm:$0xff]
        %v1048 = vld [vmem:[#allocation3 + $0x10] sm:$0xff]
        %v1049 = vld [vmem:[#allocation3 + $0x18] sm:$0xff]
        %v1050 = vld [vmem:[#allocation3 + $0x20] sm:$0xff]
        %v1051 = vld [vmem:[#allocation3 + $0x28] sm:$0xff]
        %v1052 = vld [vmem:[#allocation3 + $0x30] sm:$0xff]
        %v1053 = vld [vmem:[#allocation3 + $0x38] sm:$0xff]
        %v1054 = vld [vmem:[#allocation3 + $0x40] sm:$0xff]
        %v1055 = vld [vmem:[#allocation3 + $0x48] sm:$0xff]
        %v1056 = vld [vmem:[#allocation3 + $0x50] sm:$0xff]
        %v1057 = vld [vmem:[#allocation3 + $0x58] sm:$0xff]
        %v1058 = vld [vmem:[#allocation3 + $0x60] sm:$0xff]
        %v1059 = vld [vmem:[#allocation3 + $0x68] sm:$0xff]
        %v1060 = vld [vmem:[#allocation3 + $0x70] sm:$0xff]
        %v1061 = vld [vmem:[#allocation3 + $0x78] sm:$0xff]
        %v1062 = vld [vmem:[#allocation3 + $0x80] sm:$0xff]
        %v1063 = vld [vmem:[#allocation3 + $0x88] sm:$0xff]
        %v1064 = vld [vmem:[#allocation3 + $0x90] sm:$0xff]
        %v1065 = vld [vmem:[#allocation3 + $0x98] sm:$0xff]
        %v1066 = vld [vmem:[#allocation3 + $0xa0] sm:$0xff]
        %v1067 = vld [vmem:[#allocation3 + $0xa8] sm:$0xff]
        %v1068 = vld [vmem:[#allocation3 + $0xb0] sm:$0xff]
        %v1069 = vld [vmem:[#allocation3 + $0xb8] sm:$0xff]
        %v1070 = vld [vmem:[#allocation3 + $0xc0] sm:$0xff]
        %v1071 = vld [vmem:[#allocation3 + $0xc8] sm:$0xff]
        %v1072 = vld [vmem:[#allocation3 + $0xd0] sm:$0xff]
        %v1073 = vld [vmem:[#allocation3 + $0xd8] sm:$0xff]
        %v1074 = vld [vmem:[#allocation3 + $0xe0] sm:$0xff]
        %v1075 = vld [vmem:[#allocation3 + $0xe8] sm:$0xff]
        %v1076 = vld [vmem:[#allocation3 + $0xf0] sm:$0xff]
        %v1077 = vld [vmem:[#allocation3 + $0xf8] sm:$0xff]
        %v1078 = vld [vmem:[#allocation3 + $0x100] sm:$0xff]
        %v1079 = vld [vmem:[#allocation3 + $0x108] sm:$0xff]
        %v1080 = vld [vmem:[#allocation3 + $0x110] sm:$0xff]
        %v1081 = vld [vmem:[#allocation3 + $0x118] sm:$0xff]
        %v1082 = vld [vmem:[#allocation3 + $0x120] sm:$0xff]
        %v1083 = vld [vmem:[#allocation3 + $0x128] sm:$0xff]
        %v1084 = vld [vmem:[#allocation3 + $0x130] sm:$0xff]
        %v1085 = vld [vmem:[#allocation3 + $0x138] sm:$0xff]
        %v1086 = vld [vmem:[#allocation3 + $0x140] sm:$0xff]
        %v1087 = vld [vmem:[#allocation3 + $0x148] sm:$0xff]
        %v1088 = vld [vmem:[#allocation3 + $0x150] sm:$0xff]
        %v1089 = vld [vmem:[#allocation3 + $0x158] sm:$0xff]
        %v1090 = vld [vmem:[#allocation3 + $0x160] sm:$0xff]
        %v1091 = vld [vmem:[#allocation3 + $0x168] sm:$0xff]
        %v1092 = vld [vmem:[#allocation3 + $0x170] sm:$0xff]
        %v1093 = vld [vmem:[#allocation3 + $0x178] sm:$0xff]
        %v1094 = vld [vmem:[#allocation3 + $0x180] sm:$0xff]
        %v1095 = vld [vmem:[#allocation3 + $0x188] sm:$0xff]
        %v1096 = vld [vmem:[#allocation3 + $0x190] sm:$0xff]
        %v1097 = vld [vmem:[#allocation3 + $0x198] sm:$0xff]
        %v1098 = vld [vmem:[#allocation3 + $0x1a0] sm:$0xff]
        %v1099 = vld [vmem:[#allocation3 + $0x1a8] sm:$0xff]
        %v1100 = vld [vmem:[#allocation3 + $0x1b0] sm:$0xff]
        %v1101 = vld [vmem:[#allocation3 + $0x1b8] sm:$0xff]
        %v1102 = vld [vmem:[#allocation3 + $0x1c0] sm:$0xff]
        %v1103 = vld [vmem:[#allocation3 + $0x1c8] sm:$0xff]
        %v1104 = vld [vmem:[#allocation3 + $0x1d0] sm:$0xff]
        %v1105 = vld [vmem:[#allocation3 + $0x1d8] sm:$0xff]
        %v1106 = vld [vmem:[#allocation3 + $0x1e0] sm:$0xff]
        %v1107 = vld [vmem:[#allocation3 + $0x1e8] sm:$0xff]
        %v1108 = vld [vmem:[#allocation3 + $0x1f0] sm:$0xff]
        %v1109 = vld [vmem:[#allocation3 + $0x1f8] sm:$0xff]
        %1110 = vmatprep.subr.mxu0 %v1047
        %1111 = vmatpush1.msra.mxu0 %v1046
        %1112 = vmatprep.subr.mxu0 %v1049
        %1113 = vmatpush1.msra.mxu0 %v1048
        %1114 = vmatprep.subr.mxu0 %v1051
        %1115 = vmatpush1.msra.mxu0 %v1050
        %1116 = vmatprep.subr.mxu0 %v1053
        %1117 = vmatpush1.msra.mxu0 %v1052
        %1118 = vmatprep.subr.mxu0 %v1055
        %1119 = vmatpush1.msra.mxu0 %v1054
        %1120 = vmatprep.subr.mxu0 %v1057
        %1121 = vmatpush1.msra.mxu0 %v1056
        %1122 = vmatprep.subr.mxu0 %v1059
        %1123 = vmatpush1.msra.mxu0 %v1058
        %1124 = vmatprep.subr.mxu0 %v1061
        %1125 = vmatpush1.msra.mxu0 %v1060
        %1126 = vmatprep.subr.mxu0 %v1063
        %1127 = vmatpush1.msra.mxu0 %v1062
        %1128 = vmatprep.subr.mxu0 %v1065
        %1129 = vmatpush1.msra.mxu0 %v1064
        %1130 = vmatprep.subr.mxu0 %v1067
        %1131 = vmatpush1.msra.mxu0 %v1066
        %1132 = vmatprep.subr.mxu0 %v1069
        %1133 = vmatpush1.msra.mxu0 %v1068
        %1134 = vmatprep.subr.mxu0 %v1071
        %1135 = vmatpush1.msra.mxu0 %v1070
        %1136 = vmatprep.subr.mxu0 %v1073
        %1137 = vmatpush1.msra.mxu0 %v1072
        %1138 = vmatprep.subr.mxu0 %v1075
        %1139 = vmatpush1.msra.mxu0 %v1074
        %1140 = vmatprep.subr.mxu0 %v1077
        %1141 = vmatpush1.msra.mxu0 %v1076
        %1142 = vmatprep.subr.mxu0 %v1079
        %1143 = vmatpush1.msra.mxu0 %v1078
        %1144 = vmatprep.subr.mxu0 %v1081
        %1145 = vmatpush1.msra.mxu0 %v1080
        %1146 = vmatprep.subr.mxu0 %v1083
        %1147 = vmatpush1.msra.mxu0 %v1082
        %1148 = vmatprep.subr.mxu0 %v1085
        %1149 = vmatpush1.msra.mxu0 %v1084
        %1150 = vmatprep.subr.mxu0 %v1087
        %1151 = vmatpush1.msra.mxu0 %v1086
        %1152 = vmatprep.subr.mxu0 %v1089
        %1153 = vmatpush1.msra.mxu0 %v1088
        %1154 = vmatprep.subr.mxu0 %v1091
        %1155 = vmatpush1.msra.mxu0 %v1090
        %1156 = vmatprep.subr.mxu0 %v1093
        %1157 = vmatpush1.msra.mxu0 %v1092
        %1158 = vmatprep.subr.mxu0 %v1095
        %1159 = vmatpush1.msra.mxu0 %v1094
        %1160 = vmatprep.subr.mxu0 %v1097
        %1161 = vmatpush1.msra.mxu0 %v1096
        %1162 = vmatprep.subr.mxu0 %v1099
        %1163 = vmatpush1.msra.mxu0 %v1098
        %1164 = vmatprep.subr.mxu0 %v1101
        %1165 = vmatpush1.msra.mxu0 %v1100
        %1166 = vmatprep.subr.mxu0 %v1103
        %1167 = vmatpush1.msra.mxu0 %v1102
        %1168 = vmatprep.subr.mxu0 %v1105
        %1169 = vmatpush1.msra.mxu0 %v1104
        %1170 = vmatprep.subr.mxu0 %v1107
        %1171 = vmatpush1.msra.mxu0 %v1106
        %1172 = vmatprep.subr.mxu0 %v1109
        %1173 = vmatpush1.msra.mxu0 %v1108
        %1174 = vmatprep.mubr.f32.mxu0 %v1035
        %1175 = vmatmul.mubr.f32.gmra.mrb[0].mxu0 %v1034
        %v1176 = vpop.f32.mrb[0].mxu0
        %v1177 = vadd.f32 0.0, %v1176
        %v1178 = vpop.f32.mrb[0].mxu0
        %v1179 = vadd.f32 0.0, %v1178
        %1180 = vmatprep.mubr.f32.mxu0 %v1037
        %1181 = vmatmul.mubr.f32.gmra.mrb[0].mxu0 %v1036
        %v1182 = vpop.f32.mrb[0].mxu0
        %v1183 = vadd.f32 0.0, %v1182
        %v1184 = vpop.f32.mrb[0].mxu0
        %v1185 = vadd.f32 0.0, %v1184
        %1186 = vdwg.mxu0
        %v1187 = vadd.f32 %v1038, %v1177
        %v1188 = vadd.f32 %v1039, %v1179
        %v1189 = vadd.f32 %v1040, %v1183
        %v1190 = vadd.f32 %v1041, %v1185
        %v1191 = vld [vmem:[#allocation6] sm:$0xff]
        %v1192 = vld [vmem:[#allocation6 + $0x8] sm:$0xff]
        %v1193 = vld [vmem:[#allocation6 + $0x10] sm:$0xff]
        %v1194 = vld [vmem:[#allocation6 + $0x18] sm:$0xff]
        %v1195 = vld [vmem:[#allocation6 + $0x20] sm:$0xff]
        %v1196 = vld [vmem:[#allocation6 + $0x28] sm:$0xff]
        %v1197 = vld [vmem:[#allocation6 + $0x30] sm:$0xff]
        %v1198 = vld [vmem:[#allocation6 + $0x38] sm:$0xff]
        %v1199 = vld [vmem:[#allocation6 + $0x40] sm:$0xff]
        %v1200 = vld [vmem:[#allocation6 + $0x48] sm:$0xff]
        %v1201 = vld [vmem:[#allocation6 + $0x50] sm:$0xff]
        %v1202 = vld [vmem:[#allocation6 + $0x58] sm:$0xff]
        %v1203 = vld [vmem:[#allocation6 + $0x60] sm:$0xff]
        %v1204 = vld [vmem:[#allocation6 + $0x68] sm:$0xff]
        %v1205 = vld [vmem:[#allocation6 + $0x70] sm:$0xff]
        %v1206 = vld [vmem:[#allocation6 + $0x78] sm:$0xff]
        %v1207 = vld [vmem:[#allocation6 + $0x80] sm:$0xff]
        %v1208 = vld [vmem:[#allocation6 + $0x88] sm:$0xff]
        %v1209 = vld [vmem:[#allocation6 + $0x90] sm:$0xff]
        %v1210 = vld [vmem:[#allocation6 + $0x98] sm:$0xff]
        %v1211 = vld [vmem:[#allocation6 + $0xa0] sm:$0xff]
        %v1212 = vld [vmem:[#allocation6 + $0xa8] sm:$0xff]
        %v1213 = vld [vmem:[#allocation6 + $0xb0] sm:$0xff]
        %v1214 = vld [vmem:[#allocation6 + $0xb8] sm:$0xff]
        %v1215 = vld [vmem:[#allocation6 + $0xc0] sm:$0xff]
        %v1216 = vld [vmem:[#allocation6 + $0xc8] sm:$0xff]
        %v1217 = vld [vmem:[#allocation6 + $0xd0] sm:$0xff]
        %v1218 = vld [vmem:[#allocation6 + $0xd8] sm:$0xff]
        %v1219 = vld [vmem:[#allocation6 + $0xe0] sm:$0xff]
        %v1220 = vld [vmem:[#allocation6 + $0xe8] sm:$0xff]
        %v1221 = vld [vmem:[#allocation6 + $0xf0] sm:$0xff]
        %v1222 = vld [vmem:[#allocation6 + $0xf8] sm:$0xff]
        %v1223 = vld [vmem:[#allocation6 + $0x100] sm:$0xff]
        %v1224 = vld [vmem:[#allocation6 + $0x108] sm:$0xff]
        %v1225 = vld [vmem:[#allocation6 + $0x110] sm:$0xff]
        %v1226 = vld [vmem:[#allocation6 + $0x118] sm:$0xff]
        %v1227 = vld [vmem:[#allocation6 + $0x120] sm:$0xff]
        %v1228 = vld [vmem:[#allocation6 + $0x128] sm:$0xff]
        %v1229 = vld [vmem:[#allocation6 + $0x130] sm:$0xff]
        %v1230 = vld [vmem:[#allocation6 + $0x138] sm:$0xff]
        %v1231 = vld [vmem:[#allocation6 + $0x140] sm:$0xff]
        %v1232 = vld [vmem:[#allocation6 + $0x148] sm:$0xff]
        %v1233 = vld [vmem:[#allocation6 + $0x150] sm:$0xff]
        %v1234 = vld [vmem:[#allocation6 + $0x158] sm:$0xff]
        %v1235 = vld [vmem:[#allocation6 + $0x160] sm:$0xff]
        %v1236 = vld [vmem:[#allocation6 + $0x168] sm:$0xff]
        %v1237 = vld [vmem:[#allocation6 + $0x170] sm:$0xff]
        %v1238 = vld [vmem:[#allocation6 + $0x178] sm:$0xff]
        %v1239 = vld [vmem:[#allocation6 + $0x180] sm:$0xff]
        %v1240 = vld [vmem:[#allocation6 + $0x188] sm:$0xff]
        %v1241 = vld [vmem:[#allocation6 + $0x190] sm:$0xff]
        %v1242 = vld [vmem:[#allocation6 + $0x198] sm:$0xff]
        %v1243 = vld [vmem:[#allocation6 + $0x1a0] sm:$0xff]
        %v1244 = vld [vmem:[#allocation6 + $0x1a8] sm:$0xff]
        %v1245 = vld [vmem:[#allocation6 + $0x1b0] sm:$0xff]
        %v1246 = vld [vmem:[#allocation6 + $0x1b8] sm:$0xff]
        %v1247 = vld [vmem:[#allocation6 + $0x1c0] sm:$0xff]
        %v1248 = vld [vmem:[#allocation6 + $0x1c8] sm:$0xff]
        %v1249 = vld [vmem:[#allocation6 + $0x1d0] sm:$0xff]
        %v1250 = vld [vmem:[#allocation6 + $0x1d8] sm:$0xff]
        %v1251 = vld [vmem:[#allocation6 + $0x1e0] sm:$0xff]
        %v1252 = vld [vmem:[#allocation6 + $0x1e8] sm:$0xff]
        %v1253 = vld [vmem:[#allocation6 + $0x1f0] sm:$0xff]
        %v1254 = vld [vmem:[#allocation6 + $0x1f8] sm:$0xff]
        %1255 = vmatprep.subr.mxu0 %v1192
        %1256 = vmatpush1.msra.mxu0 %v1191
        %1257 = vmatprep.subr.mxu0 %v1194
        %1258 = vmatpush1.msra.mxu0 %v1193
        %1259 = vmatprep.subr.mxu0 %v1196
        %1260 = vmatpush1.msra.mxu0 %v1195
        %1261 = vmatprep.subr.mxu0 %v1198
        %1262 = vmatpush1.msra.mxu0 %v1197
        %1263 = vmatprep.subr.mxu0 %v1200
        %1264 = vmatpush1.msra.mxu0 %v1199
        %1265 = vmatprep.subr.mxu0 %v1202
        %1266 = vmatpush1.msra.mxu0 %v1201
        %1267 = vmatprep.subr.mxu0 %v1204
        %1268 = vmatpush1.msra.mxu0 %v1203
        %1269 = vmatprep.subr.mxu0 %v1206
        %1270 = vmatpush1.msra.mxu0 %v1205
        %1271 = vmatprep.subr.mxu0 %v1208
        %1272 = vmatpush1.msra.mxu0 %v1207
        %1273 = vmatprep.subr.mxu0 %v1210
        %1274 = vmatpush1.msra.mxu0 %v1209
        %1275 = vmatprep.subr.mxu0 %v1212
        %1276 = vmatpush1.msra.mxu0 %v1211
        %1277 = vmatprep.subr.mxu0 %v1214
        %1278 = vmatpush1.msra.mxu0 %v1213
        %1279 = vmatprep.subr.mxu0 %v1216
        %1280 = vmatpush1.msra.mxu0 %v1215
        %1281 = vmatprep.subr.mxu0 %v1218
        %1282 = vmatpush1.msra.mxu0 %v1217
        %1283 = vmatprep.subr.mxu0 %v1220
        %1284 = vmatpush1.msra.mxu0 %v1219
        %1285 = vmatprep.subr.mxu0 %v1222
        %1286 = vmatpush1.msra.mxu0 %v1221
        %1287 = vmatprep.subr.mxu0 %v1224
        %1288 = vmatpush1.msra.mxu0 %v1223
        %1289 = vmatprep.subr.mxu0 %v1226
        %1290 = vmatpush1.msra.mxu0 %v1225
        %1291 = vmatprep.subr.mxu0 %v1228
        %1292 = vmatpush1.msra.mxu0 %v1227
        %1293 = vmatprep.subr.mxu0 %v1230
        %1294 = vmatpush1.msra.mxu0 %v1229
        %1295 = vmatprep.subr.mxu0 %v1232
        %1296 = vmatpush1.msra.mxu0 %v1231
        %1297 = vmatprep.subr.mxu0 %v1234
        %1298 = vmatpush1.msra.mxu0 %v1233
        %1299 = vmatprep.subr.mxu0 %v1236
        %1300 = vmatpush1.msra.mxu0 %v1235
        %1301 = vmatprep.subr.mxu0 %v1238
        %1302 = vmatpush1.msra.mxu0 %v1237
        %1303 = vmatprep.subr.mxu0 %v1240
        %1304 = vmatpush1.msra.mxu0 %v1239
        %1305 = vmatprep.subr.mxu0 %v1242
        %1306 = vmatpush1.msra.mxu0 %v1241
        %1307 = vmatprep.subr.mxu0 %v1244
        %1308 = vmatpush1.msra.mxu0 %v1243
        %1309 = vmatprep.subr.mxu0 %v1246
        %1310 = vmatpush1.msra.mxu0 %v1245
        %1311 = vmatprep.subr.mxu0 %v1248
        %1312 = vmatpush1.msra.mxu0 %v1247
        %1313 = vmatprep.subr.mxu0 %v1250
        %1314 = vmatpush1.msra.mxu0 %v1249
        %1315 = vmatprep.subr.mxu0 %v1252
        %1316 = vmatpush1.msra.mxu0 %v1251
        %1317 = vmatprep.subr.mxu0 %v1254
        %1318 = vmatpush1.msra.mxu0 %v1253
        %1319 = vmatprep.mubr.f32.mxu0 %v1043
        %1320 = vmatmul.mubr.f32.gmra.mrb[0].mxu0 %v1042
        %v1321 = vpop.f32.mrb[0].mxu0
        %v1322 = vadd.f32 0.0, %v1321
        %v1323 = vpop.f32.mrb[0].mxu0
        %v1324 = vadd.f32 0.0, %v1323
        %1325 = vmatprep.mubr.f32.mxu0 %v1045
        %1326 = vmatmul.mubr.f32.gmra.mrb[0].mxu0 %v1044
        %v1327 = vpop.f32.mrb[0].mxu0
        %v1328 = vadd.f32 0.0, %v1327
        %v1329 = vpop.f32.mrb[0].mxu0
        %v1330 = vadd.f32 0.0, %v1329
        %1331 = vdwg.mxu0
        %v1332 = vadd.f32 %v1187, %v1322
        %v1333 = vadd.f32 %v1188, %v1324
        %v1334 = vadd.f32 %v1189, %v1328
        %v1335 = vadd.f32 %v1190, %v1330
        %v1336 = vld [vmem:[%s333] sm:$0xff]
        %v1337 = vld [vmem:[%s333 + $0x8] sm:$0xff]
        %1338 = vst [vmem:[%s328] sm:$0xff] %v1336
        %1339 = vst [vmem:[%s328 + $0x8] sm:$0xff] %v1337
        %1340 = vst [vmem:[%s328 + $0x10] sm:$0xff] %v1332
        %1341 = vst [vmem:[%s328 + $0x18] sm:$0xff] %v1333
        %1342 = vst [vmem:[%s328 + $0x20] sm:$0xff] %v1334
        %1343 = vst [vmem:[%s328 + $0x28] sm:$0xff] %v1335
        %s1344 = sand.u32 %s205, 1
        %s1345 = scalar_lea.sflag [#allocation5], %s1344
        %s1346 = sand.u32 %s205, 1
        %s1347 = smul.addr %s1346, 48
        %s1348 = scalar_lea.vmem [#allocation8], %s1347
        // Predicated region
        $region61: #{tpu_custom_call.1} parent=51 // pred_check
          %p1349 = pneg %p215
        $region62: #{tpu_custom_call.1} parent=51 // pred_check_branch
          %1351 = sbr.rel (%p1349) target = $region64
        $region63: #{tpu_custom_call.1} parent=51 // pred_region
          %s1353 = ssub.s32 768, 768
          %1354 = vsyncadd %s1345, %s1353
          %s1355 = smul.addr %s24, 6
          %s1356 = smul.addr %s1355, 128
          %s1357 = scalar_lea.hbm %s8, %s1356
          %s1358 = sshll.u32 %s1348, 4
          %s1359 = int_to_ptr.vmem [resolvable:$true] %s1358
          %1364 = dma.vmem_to_hbm [thread:$0]  %s1359, 768, %s1357, %s1345, 256, 256, 16
        $region64: #{tpu_custom_call.1} parent=51 // pred_fallthru
          _
      $region52: #{tpu_custom_call.1} parent=5 // pred_fallthru
        _
      %p1365 = scmp.le.s32.totalorder 2, %s19
      // Predicated region
      $region65: #{tpu_custom_call.1} parent=5 // pred_check
        %p1366 = pneg %p1365
      $region66: #{tpu_custom_call.1} parent=5 // pred_check_branch
        %1368 = sbr.rel (%p1366) target = $region68
      $region67: #{tpu_custom_call.1} parent=5 // pred_region
        %s1369 = ssub.s32 %s19, 2
        // Predicated region
        $region69: #{tpu_custom_call.1} parent=67 // pred_check
          %p1370 = pneg %p221
        $region70: #{tpu_custom_call.1} parent=67 // pred_check_branch
          %1372 = sbr.rel (%p1370) target = $region72
        $region71: #{tpu_custom_call.1} parent=67 // pred_region
          %s1373 = sand.u32 %s206, 1
          %s1374 = scalar_lea.sflag [#allocation5], %s1373
          %s1375 = sand.u32 %s206, 1
          %s1376 = smul.addr %s1375, 48
          %s1377 = scalar_lea.vmem [#allocation8], %s1376
          %1378 = dma.done %s1374, 768
        $region72: #{tpu_custom_call.1} parent=67 // pred_fallthru
          _
      $region68: #{tpu_custom_call.1} parent=5 // pred_fallthru
        _
    $region6: #{tpu_custom_call.1} parent=1 // loop_footer
      %s23 = sadd.s32 1, %s19
    $region7: #{tpu_custom_call.1} parent=1 // loop_footer_branch
      %18 = sbr.rel target = $region3
    $region8: #{tpu_custom_call.1} parent=1 // loop_exit
      _
    %1379 = vsyncpa [#allocation4], 1
    %s1380 = scalar_lea.sflag [#allocation4], 1
    %1381 = vsyncpa %s1380, 1
    %1382 = vsyncpa [#allocation7], 1
    %1383 = vsyncpa [#allocation5], 1
    %s1384 = scalar_lea.sflag [#allocation5], 1
    %1385 = vsyncpa %s1384, 1

</llo_original>
